<compile_context>
chip_gen: v7x
topology: tpu7x:2x2x1
jax: 0.10.0
libtpu: 0.0.40
codegen_flags: <defaults>
</compile_context>

<pallas_src>
import functools
import math

import jax
import jax.numpy as jnp
from jax.experimental import pallas as pl
from jax.experimental.pallas import tpu as pltpu


# ----------------------------------------------------------------------------
# Helpers
# ----------------------------------------------------------------------------
def _roll_lanes(x, shift):
    """rolled[:, j] = x[:, (j - shift) % E]  (== jnp.roll(x, shift, axis=-1)).

    Uses the native XLU lane rotate (pltpu.roll) when the lane width is
    vreg-aligned; otherwise a static slice+concat (pure lane-shuffle work,
    no VALU/MXU cost, unambiguous direction).
    """
    e = x.shape[-1]
    shift = shift % e
    if shift == 0:
        return x
    if e % 128 == 0:
        return pltpu.roll(x, shift, 1)
    return jnp.concatenate([x[:, e - shift:], x[:, :e - shift]], axis=-1)


def _pick_tile_and_vmem(n, e, aw_pad, n_streams, need_weights, tile_n):
    """Derive the row-tile size and vmem_limit_bytes from actual buffer sizes."""
    try:
        vmem_cap = int(pltpu.get_tpu_info().vmem_capacity_bytes)
    except Exception:
        vmem_cap = 64 * 1024 * 1024  # conservative floor (v7x per-core VMEM)
    budget = (vmem_cap * 7) // 10

    # Constant-index weight/bias blocks (auto-pipeline still allocates 2 bufs).
    weight_bytes = 2 * 4 * (4 * e * e + 4 * e)

    def working_set(t):
        io = 2 * 4 * t * (n_streams * e + e + (aw_pad if need_weights else 0))
        temps = 4 * t * (8 * e + (aw_pad if need_weights else 0))
        return weight_bytes + io + temps

    if tile_n is None:
        tile_n = 8
        for cand in (2048, 1024, 512, 256, 128, 64, 32, 16, 8):
            if working_set(cand) <= budget:
                tile_n = cand
                break
    tile_n = min(int(tile_n), n)
    if tile_n < n:
        tile_n = max(8, (tile_n // 8) * 8)   # sublane constraint for tiled blocks

    vmem_limit = max(working_set(tile_n) + (4 << 20), 32 << 20)
    vmem_limit = min(vmem_limit, vmem_cap - (2 << 20))
    return int(tile_n), int(vmem_limit)


# ----------------------------------------------------------------------------
# Fused Pallas kernel
# ----------------------------------------------------------------------------
def _fused_mha_kernel(*refs, num_heads, head_dim, self_attn, need_weights):
    """One row-tile (T rows, row n = seq*B + batch) of the fused forward.

    refs (inputs then outputs):
      self_attn : x(T,E), Wqkv(E,3E), Wo(E,E), bqkv(1,3E), bo(1,E) | o(T,E) [, aw(T,AW_PAD)]
      general   : q,k,v(T,E), Wqkv(3,E,E), Wo(E,E), bqkv(3,E), bo(1,E) | o(T,E) [, aw(T,AW_PAD)]
    """
    h, d = num_heads, head_dim
    e = h * d
    scale = 1.0 / math.sqrt(d)

    if self_attn:
        x_ref, w_qkv_ref, w_o_ref, b_qkv_ref, b_o_ref, *out_refs = refs
    else:
        q_ref, k_ref, v_ref, w_qkv_ref, w_o_ref, b_qkv_ref, b_o_ref, *out_refs = refs
    o_ref = out_refs[0]
    aw_ref = out_refs[1] if need_weights else None

    # ---- Q/K/V projections on the MXU (one wide matmul when q is k is v) ----
    if self_attn:
        qkv = jnp.dot(x_ref[...], w_qkv_ref[...],
                      preferred_element_type=jnp.float32) + b_qkv_ref[...]
        q = qkv[:, 0 * e:1 * e]
        k = qkv[:, 1 * e:2 * e]
        v = qkv[:, 2 * e:3 * e]
    else:
        bias = b_qkv_ref[...]
        q = jnp.dot(q_ref[...], w_qkv_ref[0], preferred_element_type=jnp.float32) + bias[0:1, :]
        k = jnp.dot(k_ref[...], w_qkv_ref[1], preferred_element_type=jnp.float32) + bias[1:2, :]
        v = jnp.dot(v_ref[...], w_qkv_ref[2], preferred_element_type=jnp.float32) + bias[2:3, :]

    # ---- per-position attention over the HEAD axis, lane-dense form ----
    # seg_ones[lane, hh] = 1 iff lane belongs to head hh (block-diagonal ones).
    lane_c = jax.lax.broadcasted_iota(jnp.int32, (e, h), 0)
    head_c = jax.lax.broadcasted_iota(jnp.int32, (e, h), 1)
    seg_ones = ((lane_c >= head_c * d) & (lane_c < (head_c + 1) * d)).astype(jnp.float32)
    head_r = jax.lax.broadcasted_iota(jnp.int32, (h, e), 0)
    lane_r = jax.lax.broadcasted_iota(jnp.int32, (h, e), 1)
    seg_ones_t = ((lane_r >= head_r * d) & (lane_r < (head_r + 1) * d)).astype(jnp.float32)

    # s_list[shift][:, hq] = scaled score(hq, hk=(hq - shift) % H)
    s_list = []
    for shift in range(h):
        k_rot = _roll_lanes(k, shift * d)
        s_list.append(scale * jnp.dot(q * k_rot, seg_ones,
                                      preferred_element_type=jnp.float32))

    # Numerically-stable softmax across the H shift-slabs (elementwise on (T,H)).
    m = s_list[0]
    for s in s_list[1:]:
        m = jnp.maximum(m, s)
    p_list = [jnp.exp(s - m) for s in s_list]
    denom = p_list[0]
    for p in p_list[1:]:
        denom = denom + p
    inv = pl.reciprocal(denom, approx=False)   # exact: returned weights match softmax
    w_list = [p * inv for p in p_list]         # (T, H) per shift

    # attn[:, hq*D + d'] = sum_shift w_shift[:, hq] * v[:, ((hq-shift)%H)*D + d']
    attn = None
    for shift in range(h):
        w_full = jnp.dot(w_list[shift], seg_ones_t, preferred_element_type=jnp.float32)
        contrib = w_full * _roll_lanes(v, shift * d)
        attn = contrib if attn is None else attn + contrib

    if need_weights:
        # Scatter w_shift[:, hq] into lane-padded column hq*H + hk via tiny
        # one-hot matmuls; the store stays full-width (AW_PAD % 128 == 0).
        aw_pad = aw_ref.shape[-1]
        hq_i = jax.lax.broadcasted_iota(jnp.int32, (h, aw_pad), 0)
        col_i = jax.lax.broadcasted_iota(jnp.int32, (h, aw_pad), 1)
        aw = None
        for shift in range(h):
            hk_i = jnp.where(hq_i >= shift, hq_i - shift, hq_i - shift + h)
            scat = (col_i == hq_i * h + hk_i).astype(jnp.float32)     # (H, AW_PAD)
            piece = jnp.dot(w_list[shift], scat, preferred_element_type=jnp.float32)
            aw = piece if aw is None else aw + piece
        aw_ref[...] = aw

    # ---- output projection (MXU), fused ----
    o_ref[...] = jnp.dot(attn, w_o_ref[...],
                         preferred_element_type=jnp.float32) + b_o_ref[...]


# ----------------------------------------------------------------------------
# Module wrapper
# ----------------------------------------------------------------------------
def init_params(key, embed_dim):
    """Deterministic init mimicking nn.Linear's uniform(-1/sqrt(in), 1/sqrt(in))."""
    ks = jax.random.split(key, 8)
    bound = 1.0 / math.sqrt(embed_dim)

    def u(k, shape):
        return jax.random.uniform(k, shape, jnp.float32, -bound, bound)

    return {
        "W_q": u(ks[0], (embed_dim, embed_dim)), "b_q": u(ks[1], (embed_dim,)),
        "W_k": u(ks[2], (embed_dim, embed_dim)), "b_k": u(ks[3], (embed_dim,)),
        "W_v": u(ks[4], (embed_dim, embed_dim)), "b_v": u(ks[5], (embed_dim,)),
        "W_o": u(ks[6], (embed_dim, embed_dim)), "b_o": u(ks[7], (embed_dim,)),
    }


def multihead_attention(params, query, key, value, num_heads,
                        key_padding_mask=None, attn_mask=None,
                        need_weights=True, tile_n=None):
    """Forward pass matching MultiheadAttention.forward (dropout=0, eval).

    query/key/value: (S, B, E).  Returns (output (S,B,E),
    attn_weights (B,S,H,H) or None when need_weights=False).
    """
    # TODO(synk): key_padding_mask / attn_mask not implemented -- the reference
    # module's masked_fill broadcast against its (B, S, H, H) scores is only
    # well-defined for degenerate mask shapes; any future masking must be
    # applied before the softmax max/exp.
    assert key_padding_mask is None and attn_mask is None

    s, b_sz, e = query.shape
    h = num_heads
    d = e // h
    assert h * d == e, "embed_dim must be divisible by num_heads"
    n = s * b_sz
    aw_pad = ((h * h + 127) // 128) * 128

    self_attn = (query is key) and (key is value)

    qf = jnp.asarray(query, jnp.float32).reshape(n, e)
    if self_attn:
        inputs = (qf,)
        w_qkv = jnp.concatenate([params["W_q"].T, params["W_k"].T, params["W_v"].T],
                                axis=1).astype(jnp.float32)                   # (E, 3E)
        b_qkv = jnp.concatenate([params["b_q"], params["b_k"], params["b_v"]]
                                ).astype(jnp.float32).reshape(1, 3 * e)       # (1, 3E)
        qkv_w_spec = pl.BlockSpec((e, 3 * e), lambda i: (0, 0))
        qkv_b_spec = pl.BlockSpec((1, 3 * e), lambda i: (0, 0))
    else:
        kf = jnp.asarray(key, jnp.float32).reshape(n, e)
        vf = jnp.asarray(value, jnp.float32).reshape(n, e)
        inputs = (qf, kf, vf)
        w_qkv = jnp.stack([params["W_q"].T, params["W_k"].T, params["W_v"].T]
                          ).astype(jnp.float32)                               # (3, E, E)
        b_qkv = jnp.stack([params["b_q"], params["b_k"], params["b_v"]]
                          ).astype(jnp.float32)                               # (3, E)
        qkv_w_spec = pl.BlockSpec((3, e, e), lambda i: (0, 0, 0))
        qkv_b_spec = pl.BlockSpec((3, e), lambda i: (0, 0))

    w_o = params["W_o"].T.astype(jnp.float32)                 # (E, E)
    b_o = params["b_o"].astype(jnp.float32).reshape(1, e)     # (1, E)

    tile_n, vmem_limit = _pick_tile_and_vmem(n, e, aw_pad, len(inputs),
                                             need_weights, tile_n)
    grid = (pl.cdiv(n, tile_n),)
    # If tile_n does not divide N the last block is ragged; all math here is
    # row-independent so padded rows never pollute valid rows.

    row_in_spec = pl.BlockSpec((tile_n, e), lambda i: (i, 0))
    in_specs = [row_in_spec] * len(inputs) + [
        qkv_w_spec,
        pl.BlockSpec((e, e), lambda i: (0, 0)),    # W_o (VMEM-resident)
        qkv_b_spec,
        pl.BlockSpec((1, e), lambda i: (0, 0)),    # b_o
    ]

    out_row_spec = pl.BlockSpec((tile_n, e), lambda i: (i, 0))
    if need_weights:
        out_shape = (jax.ShapeDtypeStruct((n, e), jnp.float32),
                     jax.ShapeDtypeStruct((n, aw_pad), jnp.float32))
        out_specs = (out_row_spec,
                     pl.BlockSpec((tile_n, aw_pad), lambda i: (i, 0)))
    else:
        out_shape = jax.ShapeDtypeStruct((n, e), jnp.float32)
        out_specs = out_row_spec

    flops = (2 * n * e * 3 * e          # QKV projections
             + 2 * n * e * e            # output projection
             + 4 * n * h * e            # segmented score + V-weighting matmuls
             + 2 * n * h * h)           # softmax arithmetic (approx)
    transcendentals = n * h * h
    bytes_accessed = 4 * (len(inputs) * n * e + n * e
                          + (n * aw_pad if need_weights else 0)
                          + 4 * e * e + 4 * e)
    cost = pl.CostEstimate(flops=int(flops),
                           transcendentals=int(transcendentals),
                           bytes_accessed=int(bytes_accessed))

    kernel = functools.partial(_fused_mha_kernel, num_heads=h, head_dim=d,
                               self_attn=self_attn, need_weights=need_weights)

    result = pl.pallas_call(
        kernel,
        out_shape=out_shape,
        grid=grid,
        in_specs=in_specs,
        out_specs=out_specs,
        compiler_params=pltpu.CompilerParams(
            dimension_semantics=("parallel",),     # megacore split over row tiles
            vmem_limit_bytes=vmem_limit),
        cost_estimate=cost,
    )(*inputs, w_qkv, w_o, b_qkv, b_o)

    if need_weights:
        out2d, aw2d = result
        # Rows are seq-major (n = s*B + b); module returns weights as (B,S,H,H).
        attn_weights = aw2d[:, :h * h].reshape(s, b_sz, h, h).transpose(1, 0, 2, 3)
    else:
        out2d = result
        attn_weights = None
    output = out2d.reshape(s, b_sz, e)
    return output, attn_weights


# ----------------------------------------------------------------------------
# Pure-JAX reference (literal transcription of the PyTorch forward)
# ----------------------------------------------------------------------------
def _reference(params, query, key, value, num_heads):
    s, b, e = query.shape
    h = num_heads
    d = e // h

    with jax.default_matmul_precision("float32"):
        def lin(x, w, bb):
            return x @ w.T + bb

        Q = lin(query, params["W_q"], params["b_q"]).reshape(s, b, h, d).transpose(1, 0, 2, 3)
        K = lin(key, params["W_k"], params["b_k"]).reshape(s, b, h, d).transpose(1, 0, 2, 3)
        V = lin(value, params["W_v"], params["b_v"]).reshape(s, b, h, d).transpose(1, 0, 2, 3)
        scores = jnp.einsum("bshd,bsgd->bshg", Q, K) / (d ** 0.5)
        w = jax.nn.softmax(scores, axis=-1)
        out = jnp.einsum("bshg,bsgd->bshd", w, V)
        out = out.transpose(1, 0, 2, 3).reshape(s, b, e)
        out = lin(out, params["W_o"], params["b_o"])
    return out, w


if __name__ == "__main__":
    def _check(S, B, E, H, tile_n=None, self_attn=False, need_weights=True):
        root = jax.random.PRNGKey(0)
        kp, kq, kk, kv = jax.random.split(root, 4)
        params = init_params(kp, E)
        query = jax.random.normal(kq, (S, B, E), jnp.float32)
        if self_attn:
            key_t = query
            value = query
        else:
            key_t = jax.random.normal(kk, (S, B, E), jnp.float32)
            value = jax.random.normal(kv, (S, B, E), jnp.float32)

        out, attn_w = multihead_attention(params, query, key_t, value, H,
                                          need_weights=need_weights, tile_n=tile_n)
        out = jax.block_until_ready(out)

        ref_out, ref_w = _reference(params, query, key_t, value, H)
        assert out.shape == (S, B, E)
        # Tolerance covers reduced-precision MXU passes in either compute path.
        assert jnp.allclose(out, ref_out, atol=1e-2, rtol=1e-2), \
            float(jnp.max(jnp.abs(out - ref_out)))
        if need_weights:
            attn_w = jax.block_until_ready(attn_w)
            assert attn_w.shape == (B, S, H, H)
            assert jnp.allclose(attn_w, ref_w, atol=1e-2, rtol=1e-2), \
                float(jnp.max(jnp.abs(attn_w - ref_w)))

    # General path, single block: seq=8, batch=2, embed_dim=32, heads=4.
    _check(S=8, B=2, E=32, H=4)
    # General path, tiled multi-block grid.
    _check(S=32, B=4, E=64, H=8, tile_n=32)
    # Self-attention fast path (fused (E,3E) QKV matmul, deduped input stream).
    _check(S=16, B=2, E=64, H=8, tile_n=16, self_attn=True)
    # Lane-aligned (E=128) path exercising the native XLU roll + need_weights=False.
    _check(S=16, B=4, E=128, H=8, tile_n=32, self_attn=True, need_weights=False)
    print("KERNEL_OK")
</pallas_src>

<mosaic_0001>
module attributes {stable_mosaic.version = 11 : i64} {
  func.func @_fused_mha_kernel(%arg0: i32, %arg1: memref<16x32xf32, #tpu.memory_space<vmem>>, %arg2: memref<16x32xf32, #tpu.memory_space<vmem>>, %arg3: memref<16x32xf32, #tpu.memory_space<vmem>>, %arg4: memref<3x32x32xf32, #tpu.memory_space<vmem>>, %arg5: memref<32x32xf32, #tpu.memory_space<vmem>>, %arg6: memref<3x32xf32, #tpu.memory_space<vmem>>, %arg7: memref<1x32xf32, #tpu.memory_space<vmem>>, %arg8: memref<16x32xf32, #tpu.memory_space<vmem>>, %arg9: memref<16x128xf32, #tpu.memory_space<vmem>>) attributes {dimension_semantics = [#tpu.dimension_semantics<parallel>], iteration_bounds = array<i64: 1>, scalar_prefetch = 0 : i64, scratch_operands = 0 : i64, tpu.core_type = #tpu.core_type<tc>, window_params = [{transform_indices = @transform_0, window_bounds = array<i64: 16, 32>}, {transform_indices = @transform_1, window_bounds = array<i64: 16, 32>}, {transform_indices = @transform_2, window_bounds = array<i64: 16, 32>}, {pipeline_mode = #tpu.pipeline_mode<synchronous>, transform_indices = @transform_3, window_bounds = array<i64: 3, 32, 32>}, {pipeline_mode = #tpu.pipeline_mode<synchronous>, transform_indices = @transform_4, window_bounds = array<i64: 32, 32>}, {pipeline_mode = #tpu.pipeline_mode<synchronous>, transform_indices = @transform_5, window_bounds = array<i64: 3, 32>}, {pipeline_mode = #tpu.pipeline_mode<synchronous>, transform_indices = @transform_6, window_bounds = array<i64: 1, 32>}, {transform_indices = @transform_7, window_bounds = array<i64: 16, 32>}, {transform_indices = @transform_8, window_bounds = array<i64: 16, 128>}]} {
    %c0 = arith.constant 0 : index
    %c0_0 = arith.constant 0 : index
    %0 = vector.load %arg6[%c0, %c0_0] : memref<3x32xf32, #tpu.memory_space<vmem>>, vector<3x32xf32>
    %c0_1 = arith.constant 0 : index
    %c0_2 = arith.constant 0 : index
    %1 = vector.load %arg1[%c0_1, %c0_2] : memref<16x32xf32, #tpu.memory_space<vmem>>, vector<16x32xf32>
    %c0_3 = arith.constant 0 : index
    %c0_4 = arith.constant 0 : index
    %c0_5 = arith.constant 0 : index
    %2 = vector.load %arg4[%c0_3, %c0_4, %c0_5] : memref<3x32x32xf32, #tpu.memory_space<vmem>>, vector<1x32x32xf32>
    %3 = vector.shape_cast %2 : vector<1x32x32xf32> to vector<32x32xf32>
    %cst = arith.constant dense<0.000000e+00> : vector<16x32xf32>
    %4 = tpu.matmul %1, %3, %cst {dimension_numbers = #tpu.dot_dimension_numbers<[1], [0], [0], [1], [0, 0, 1, 1], [], []>} : vector<16x32xf32>, vector<32x32xf32>, vector<16x32xf32> -> vector<16x32xf32>
    %5 = vector.extract_strided_slice %0 {offsets = [0, 0], sizes = [1, 32], strides = [1, 1]} : vector<3x32xf32> to vector<1x32xf32>
    %6 = vector.broadcast %5 : vector<1x32xf32> to vector<16x32xf32>
    %7 = arith.addf %4, %6 : vector<16x32xf32>
    %c0_6 = arith.constant 0 : index
    %c0_7 = arith.constant 0 : index
    %8 = vector.load %arg2[%c0_6, %c0_7] : memref<16x32xf32, #tpu.memory_space<vmem>>, vector<16x32xf32>
    %c1 = arith.constant 1 : index
    %c0_8 = arith.constant 0 : index
    %c0_9 = arith.constant 0 : index
    %9 = vector.load %arg4[%c1, %c0_8, %c0_9] : memref<3x32x32xf32, #tpu.memory_space<vmem>>, vector<1x32x32xf32>
    %10 = vector.shape_cast %9 : vector<1x32x32xf32> to vector<32x32xf32>
    %cst_10 = arith.constant dense<0.000000e+00> : vector<16x32xf32>
    %11 = tpu.matmul %8, %10, %cst_10 {dimension_numbers = #tpu.dot_dimension_numbers<[1], [0], [0], [1], [0, 0, 1, 1], [], []>} : vector<16x32xf32>, vector<32x32xf32>, vector<16x32xf32> -> vector<16x32xf32>
    %12 = vector.extract_strided_slice %0 {offsets = [1, 0], sizes = [1, 32], strides = [1, 1]} : vector<3x32xf32> to vector<1x32xf32>
    %13 = vector.broadcast %12 : vector<1x32xf32> to vector<16x32xf32>
    %14 = arith.addf %11, %13 : vector<16x32xf32>
    %c0_11 = arith.constant 0 : index
    %c0_12 = arith.constant 0 : index
    %15 = vector.load %arg3[%c0_11, %c0_12] : memref<16x32xf32, #tpu.memory_space<vmem>>, vector<16x32xf32>
    %c2 = arith.constant 2 : index
    %c0_13 = arith.constant 0 : index
    %c0_14 = arith.constant 0 : index
    %16 = vector.load %arg4[%c2, %c0_13, %c0_14] : memref<3x32x32xf32, #tpu.memory_space<vmem>>, vector<1x32x32xf32>
    %17 = vector.shape_cast %16 : vector<1x32x32xf32> to vector<32x32xf32>
    %cst_15 = arith.constant dense<0.000000e+00> : vector<16x32xf32>
    %18 = tpu.matmul %15, %17, %cst_15 {dimension_numbers = #tpu.dot_dimension_numbers<[1], [0], [0], [1], [0, 0, 1, 1], [], []>} : vector<16x32xf32>, vector<32x32xf32>, vector<16x32xf32> -> vector<16x32xf32>
    %19 = vector.extract_strided_slice %0 {offsets = [2, 0], sizes = [1, 32], strides = [1, 1]} : vector<3x32xf32> to vector<1x32xf32>
    %20 = vector.broadcast %19 : vector<1x32xf32> to vector<16x32xf32>
    %21 = arith.addf %18, %20 : vector<16x32xf32>
    %22 = tpu.iota {dimensions = array<i32: 0>} : vector<32x4xi32>
    %23 = tpu.iota {dimensions = array<i32: 1>} : vector<32x4xi32>
    %c8_i32 = arith.constant 8 : i32
    %24 = vector.broadcast %c8_i32 : i32 to vector<32x4xi32>
    %25 = arith.muli %23, %24 : vector<32x4xi32>
    %26 = arith.cmpi sge, %22, %25 : vector<32x4xi32>
    %c1_i32 = arith.constant 1 : i32
    %27 = vector.broadcast %c1_i32 : i32 to vector<32x4xi32>
    %28 = arith.addi %23, %27 : vector<32x4xi32>
    %c8_i32_16 = arith.constant 8 : i32
    %29 = vector.broadcast %c8_i32_16 : i32 to vector<32x4xi32>
    %30 = arith.muli %28, %29 : vector<32x4xi32>
    %31 = arith.cmpi slt, %22, %30 : vector<32x4xi32>
    %32 = arith.andi %26, %31 : vector<32x4xi1>
    %33 = arith.extui %32 : vector<32x4xi1> to vector<32x4xi32>
    %34 = arith.sitofp %33 : vector<32x4xi32> to vector<32x4xf32>
    %35 = tpu.iota {dimensions = array<i32: 0>} : vector<4x32xi32>
    %36 = tpu.iota {dimensions = array<i32: 1>} : vector<4x32xi32>
    %c8_i32_17 = arith.constant 8 : i32
    %37 = vector.broadcast %c8_i32_17 : i32 to vector<4x32xi32>
    %38 = arith.muli %35, %37 : vector<4x32xi32>
    %39 = arith.cmpi sge, %36, %38 : vector<4x32xi32>
    %c1_i32_18 = arith.constant 1 : i32
    %40 = vector.broadcast %c1_i32_18 : i32 to vector<4x32xi32>
    %41 = arith.addi %35, %40 : vector<4x32xi32>
    %c8_i32_19 = arith.constant 8 : i32
    %42 = vector.broadcast %c8_i32_19 : i32 to vector<4x32xi32>
    %43 = arith.muli %41, %42 : vector<4x32xi32>
    %44 = arith.cmpi slt, %36, %43 : vector<4x32xi32>
    %45 = arith.andi %39, %44 : vector<4x32xi1>
    %46 = arith.extui %45 : vector<4x32xi1> to vector<4x32xi32>
    %47 = arith.sitofp %46 : vector<4x32xi32> to vector<4x32xf32>
    %48 = arith.mulf %7, %14 : vector<16x32xf32>
    %cst_20 = arith.constant dense<0.000000e+00> : vector<16x4xf32>
    %49 = tpu.matmul %48, %34, %cst_20 {dimension_numbers = #tpu.dot_dimension_numbers<[1], [0], [0], [1], [0, 0, 1, 1], [], []>} : vector<16x32xf32>, vector<32x4xf32>, vector<16x4xf32> -> vector<16x4xf32>
    %cst_21 = arith.constant 0.353553385 : f32
    %50 = vector.broadcast %cst_21 : f32 to vector<16x4xf32>
    %51 = arith.mulf %50, %49 : vector<16x4xf32>
    %52 = vector.extract_strided_slice %14 {offsets = [0, 24], sizes = [16, 8], strides = [1, 1]} : vector<16x32xf32> to vector<16x8xf32>
    %53 = vector.extract_strided_slice %14 {offsets = [0, 0], sizes = [16, 24], strides = [1, 1]} : vector<16x32xf32> to vector<16x24xf32>
    %54 = tpu.concatenate %52, %53 in 1 : vector<16x8xf32>, vector<16x24xf32> -> vector<16x32xf32>
    %55 = arith.mulf %7, %54 : vector<16x32xf32>
    %cst_22 = arith.constant dense<0.000000e+00> : vector<16x4xf32>
    %56 = tpu.matmul %55, %34, %cst_22 {dimension_numbers = #tpu.dot_dimension_numbers<[1], [0], [0], [1], [0, 0, 1, 1], [], []>} : vector<16x32xf32>, vector<32x4xf32>, vector<16x4xf32> -> vector<16x4xf32>
    %cst_23 = arith.constant 0.353553385 : f32
    %57 = vector.broadcast %cst_23 : f32 to vector<16x4xf32>
    %58 = arith.mulf %57, %56 : vector<16x4xf32>
    %59 = vector.extract_strided_slice %14 {offsets = [0, 16], sizes = [16, 16], strides = [1, 1]} : vector<16x32xf32> to vector<16x16xf32>
    %60 = vector.extract_strided_slice %14 {offsets = [0, 0], sizes = [16, 16], strides = [1, 1]} : vector<16x32xf32> to vector<16x16xf32>
    %61 = tpu.concatenate %59, %60 in 1 : vector<16x16xf32>, vector<16x16xf32> -> vector<16x32xf32>
    %62 = arith.mulf %7, %61 : vector<16x32xf32>
    %cst_24 = arith.constant dense<0.000000e+00> : vector<16x4xf32>
    %63 = tpu.matmul %62, %34, %cst_24 {dimension_numbers = #tpu.dot_dimension_numbers<[1], [0], [0], [1], [0, 0, 1, 1], [], []>} : vector<16x32xf32>, vector<32x4xf32>, vector<16x4xf32> -> vector<16x4xf32>
    %cst_25 = arith.constant 0.353553385 : f32
    %64 = vector.broadcast %cst_25 : f32 to vector<16x4xf32>
    %65 = arith.mulf %64, %63 : vector<16x4xf32>
    %66 = vector.extract_strided_slice %14 {offsets = [0, 8], sizes = [16, 24], strides = [1, 1]} : vector<16x32xf32> to vector<16x24xf32>
    %67 = vector.extract_strided_slice %14 {offsets = [0, 0], sizes = [16, 8], strides = [1, 1]} : vector<16x32xf32> to vector<16x8xf32>
    %68 = tpu.concatenate %66, %67 in 1 : vector<16x24xf32>, vector<16x8xf32> -> vector<16x32xf32>
    %69 = arith.mulf %7, %68 : vector<16x32xf32>
    %cst_26 = arith.constant dense<0.000000e+00> : vector<16x4xf32>
    %70 = tpu.matmul %69, %34, %cst_26 {dimension_numbers = #tpu.dot_dimension_numbers<[1], [0], [0], [1], [0, 0, 1, 1], [], []>} : vector<16x32xf32>, vector<32x4xf32>, vector<16x4xf32> -> vector<16x4xf32>
    %cst_27 = arith.constant 0.353553385 : f32
    %71 = vector.broadcast %cst_27 : f32 to vector<16x4xf32>
    %72 = arith.mulf %71, %70 : vector<16x4xf32>
    %73 = arith.maximumf %51, %58 : vector<16x4xf32>
    %74 = arith.maximumf %73, %65 : vector<16x4xf32>
    %75 = arith.maximumf %74, %72 : vector<16x4xf32>
    %76 = arith.subf %51, %75 : vector<16x4xf32>
    %77 = math.exp %76 : vector<16x4xf32>
    %78 = arith.subf %58, %75 : vector<16x4xf32>
    %79 = math.exp %78 : vector<16x4xf32>
    %80 = arith.subf %65, %75 : vector<16x4xf32>
    %81 = math.exp %80 : vector<16x4xf32>
    %82 = arith.subf %72, %75 : vector<16x4xf32>
    %83 = math.exp %82 : vector<16x4xf32>
    %84 = arith.addf %77, %79 : vector<16x4xf32>
    %85 = arith.addf %84, %81 : vector<16x4xf32>
    %86 = arith.addf %85, %83 : vector<16x4xf32>
    %87 = tpu.reciprocal %86 : vector<16x4xf32> -> vector<16x4xf32>
    %88 = arith.mulf %77, %87 : vector<16x4xf32>
    %89 = arith.mulf %79, %87 : vector<16x4xf32>
    %90 = arith.mulf %81, %87 : vector<16x4xf32>
    %91 = arith.mulf %83, %87 : vector<16x4xf32>
    %cst_28 = arith.constant dense<0.000000e+00> : vector<16x32xf32>
    %92 = tpu.matmul %88, %47, %cst_28 {dimension_numbers = #tpu.dot_dimension_numbers<[1], [0], [0], [1], [0, 0, 1, 1], [], []>} : vector<16x4xf32>, vector<4x32xf32>, vector<16x32xf32> -> vector<16x32xf32>
    %93 = arith.mulf %92, %21 : vector<16x32xf32>
    %cst_29 = arith.constant dense<0.000000e+00> : vector<16x32xf32>
    %94 = tpu.matmul %89, %47, %cst_29 {dimension_numbers = #tpu.dot_dimension_numbers<[1], [0], [0], [1], [0, 0, 1, 1], [], []>} : vector<16x4xf32>, vector<4x32xf32>, vector<16x32xf32> -> vector<16x32xf32>
    %95 = vector.extract_strided_slice %21 {offsets = [0, 24], sizes = [16, 8], strides = [1, 1]} : vector<16x32xf32> to vector<16x8xf32>
    %96 = vector.extract_strided_slice %21 {offsets = [0, 0], sizes = [16, 24], strides = [1, 1]} : vector<16x32xf32> to vector<16x24xf32>
    %97 = tpu.concatenate %95, %96 in 1 : vector<16x8xf32>, vector<16x24xf32> -> vector<16x32xf32>
    %98 = arith.mulf %94, %97 : vector<16x32xf32>
    %99 = arith.addf %93, %98 : vector<16x32xf32>
    %cst_30 = arith.constant dense<0.000000e+00> : vector<16x32xf32>
    %100 = tpu.matmul %90, %47, %cst_30 {dimension_numbers = #tpu.dot_dimension_numbers<[1], [0], [0], [1], [0, 0, 1, 1], [], []>} : vector<16x4xf32>, vector<4x32xf32>, vector<16x32xf32> -> vector<16x32xf32>
    %101 = vector.extract_strided_slice %21 {offsets = [0, 16], sizes = [16, 16], strides = [1, 1]} : vector<16x32xf32> to vector<16x16xf32>
    %102 = vector.extract_strided_slice %21 {offsets = [0, 0], sizes = [16, 16], strides = [1, 1]} : vector<16x32xf32> to vector<16x16xf32>
    %103 = tpu.concatenate %101, %102 in 1 : vector<16x16xf32>, vector<16x16xf32> -> vector<16x32xf32>
    %104 = arith.mulf %100, %103 : vector<16x32xf32>
    %105 = arith.addf %99, %104 : vector<16x32xf32>
    %cst_31 = arith.constant dense<0.000000e+00> : vector<16x32xf32>
    %106 = tpu.matmul %91, %47, %cst_31 {dimension_numbers = #tpu.dot_dimension_numbers<[1], [0], [0], [1], [0, 0, 1, 1], [], []>} : vector<16x4xf32>, vector<4x32xf32>, vector<16x32xf32> -> vector<16x32xf32>
    %107 = vector.extract_strided_slice %21 {offsets = [0, 8], sizes = [16, 24], strides = [1, 1]} : vector<16x32xf32> to vector<16x24xf32>
    %108 = vector.extract_strided_slice %21 {offsets = [0, 0], sizes = [16, 8], strides = [1, 1]} : vector<16x32xf32> to vector<16x8xf32>
    %109 = tpu.concatenate %107, %108 in 1 : vector<16x24xf32>, vector<16x8xf32> -> vector<16x32xf32>
    %110 = arith.mulf %106, %109 : vector<16x32xf32>
    %111 = arith.addf %105, %110 : vector<16x32xf32>
    %112 = tpu.iota {dimensions = array<i32: 0>} : vector<4x128xi32>
    %113 = tpu.iota {dimensions = array<i32: 1>} : vector<4x128xi32>
    %c0_i32 = arith.constant 0 : i32
    %114 = vector.broadcast %c0_i32 : i32 to vector<4x128xi32>
    %115 = arith.cmpi sge, %112, %114 : vector<4x128xi32>
    %c0_i32_32 = arith.constant 0 : i32
    %116 = vector.broadcast %c0_i32_32 : i32 to vector<4x128xi32>
    %117 = arith.subi %112, %116 : vector<4x128xi32>
    %c0_i32_33 = arith.constant 0 : i32
    %118 = vector.broadcast %c0_i32_33 : i32 to vector<4x128xi32>
    %119 = arith.subi %112, %118 : vector<4x128xi32>
    %c4_i32 = arith.constant 4 : i32
    %120 = vector.broadcast %c4_i32 : i32 to vector<4x128xi32>
    %121 = arith.addi %119, %120 : vector<4x128xi32>
    %122 = arith.select %115, %117, %121 : vector<4x128xi1>, vector<4x128xi32>
    %c4_i32_34 = arith.constant 4 : i32
    %123 = vector.broadcast %c4_i32_34 : i32 to vector<4x128xi32>
    %124 = arith.muli %112, %123 : vector<4x128xi32>
    %125 = arith.addi %124, %122 : vector<4x128xi32>
    %126 = arith.cmpi eq, %113, %125 : vector<4x128xi32>
    %127 = arith.extui %126 : vector<4x128xi1> to vector<4x128xi32>
    %128 = arith.sitofp %127 : vector<4x128xi32> to vector<4x128xf32>
    %cst_35 = arith.constant dense<0.000000e+00> : vector<16x128xf32>
    %129 = tpu.matmul %88, %128, %cst_35 {dimension_numbers = #tpu.dot_dimension_numbers<[1], [0], [0], [1], [0, 0, 1, 1], [], []>} : vector<16x4xf32>, vector<4x128xf32>, vector<16x128xf32> -> vector<16x128xf32>
    %c1_i32_36 = arith.constant 1 : i32
    %130 = vector.broadcast %c1_i32_36 : i32 to vector<4x128xi32>
    %131 = arith.cmpi sge, %112, %130 : vector<4x128xi32>
    %c1_i32_37 = arith.constant 1 : i32
    %132 = vector.broadcast %c1_i32_37 : i32 to vector<4x128xi32>
    %133 = arith.subi %112, %132 : vector<4x128xi32>
    %c1_i32_38 = arith.constant 1 : i32
    %134 = vector.broadcast %c1_i32_38 : i32 to vector<4x128xi32>
    %135 = arith.subi %112, %134 : vector<4x128xi32>
    %c4_i32_39 = arith.constant 4 : i32
    %136 = vector.broadcast %c4_i32_39 : i32 to vector<4x128xi32>
    %137 = arith.addi %135, %136 : vector<4x128xi32>
    %138 = arith.select %131, %133, %137 : vector<4x128xi1>, vector<4x128xi32>
    %c4_i32_40 = arith.constant 4 : i32
    %139 = vector.broadcast %c4_i32_40 : i32 to vector<4x128xi32>
    %140 = arith.muli %112, %139 : vector<4x128xi32>
    %141 = arith.addi %140, %138 : vector<4x128xi32>
    %142 = arith.cmpi eq, %113, %141 : vector<4x128xi32>
    %143 = arith.extui %142 : vector<4x128xi1> to vector<4x128xi32>
    %144 = arith.sitofp %143 : vector<4x128xi32> to vector<4x128xf32>
    %cst_41 = arith.constant dense<0.000000e+00> : vector<16x128xf32>
    %145 = tpu.matmul %89, %144, %cst_41 {dimension_numbers = #tpu.dot_dimension_numbers<[1], [0], [0], [1], [0, 0, 1, 1], [], []>} : vector<16x4xf32>, vector<4x128xf32>, vector<16x128xf32> -> vector<16x128xf32>
    %146 = arith.addf %129, %145 : vector<16x128xf32>
    %c2_i32 = arith.constant 2 : i32
    %147 = vector.broadcast %c2_i32 : i32 to vector<4x128xi32>
    %148 = arith.cmpi sge, %112, %147 : vector<4x128xi32>
    %c2_i32_42 = arith.constant 2 : i32
    %149 = vector.broadcast %c2_i32_42 : i32 to vector<4x128xi32>
    %150 = arith.subi %112, %149 : vector<4x128xi32>
    %c2_i32_43 = arith.constant 2 : i32
    %151 = vector.broadcast %c2_i32_43 : i32 to vector<4x128xi32>
    %152 = arith.subi %112, %151 : vector<4x128xi32>
    %c4_i32_44 = arith.constant 4 : i32
    %153 = vector.broadcast %c4_i32_44 : i32 to vector<4x128xi32>
    %154 = arith.addi %152, %153 : vector<4x128xi32>
    %155 = arith.select %148, %150, %154 : vector<4x128xi1>, vector<4x128xi32>
    %c4_i32_45 = arith.constant 4 : i32
    %156 = vector.broadcast %c4_i32_45 : i32 to vector<4x128xi32>
    %157 = arith.muli %112, %156 : vector<4x128xi32>
    %158 = arith.addi %157, %155 : vector<4x128xi32>
    %159 = arith.cmpi eq, %113, %158 : vector<4x128xi32>
    %160 = arith.extui %159 : vector<4x128xi1> to vector<4x128xi32>
    %161 = arith.sitofp %160 : vector<4x128xi32> to vector<4x128xf32>
    %cst_46 = arith.constant dense<0.000000e+00> : vector<16x128xf32>
    %162 = tpu.matmul %90, %161, %cst_46 {dimension_numbers = #tpu.dot_dimension_numbers<[1], [0], [0], [1], [0, 0, 1, 1], [], []>} : vector<16x4xf32>, vector<4x128xf32>, vector<16x128xf32> -> vector<16x128xf32>
    %163 = arith.addf %146, %162 : vector<16x128xf32>
    %c3_i32 = arith.constant 3 : i32
    %164 = vector.broadcast %c3_i32 : i32 to vector<4x128xi32>
    %165 = arith.cmpi sge, %112, %164 : vector<4x128xi32>
    %c3_i32_47 = arith.constant 3 : i32
    %166 = vector.broadcast %c3_i32_47 : i32 to vector<4x128xi32>
    %167 = arith.subi %112, %166 : vector<4x128xi32>
    %c3_i32_48 = arith.constant 3 : i32
    %168 = vector.broadcast %c3_i32_48 : i32 to vector<4x128xi32>
    %169 = arith.subi %112, %168 : vector<4x128xi32>
    %c4_i32_49 = arith.constant 4 : i32
    %170 = vector.broadcast %c4_i32_49 : i32 to vector<4x128xi32>
    %171 = arith.addi %169, %170 : vector<4x128xi32>
    %172 = arith.select %165, %167, %171 : vector<4x128xi1>, vector<4x128xi32>
    %c4_i32_50 = arith.constant 4 : i32
    %173 = vector.broadcast %c4_i32_50 : i32 to vector<4x128xi32>
    %174 = arith.muli %112, %173 : vector<4x128xi32>
    %175 = arith.addi %174, %172 : vector<4x128xi32>
    %176 = arith.cmpi eq, %113, %175 : vector<4x128xi32>
    %177 = arith.extui %176 : vector<4x128xi1> to vector<4x128xi32>
    %178 = arith.sitofp %177 : vector<4x128xi32> to vector<4x128xf32>
    %cst_51 = arith.constant dense<0.000000e+00> : vector<16x128xf32>
    %179 = tpu.matmul %91, %178, %cst_51 {dimension_numbers = #tpu.dot_dimension_numbers<[1], [0], [0], [1], [0, 0, 1, 1], [], []>} : vector<16x4xf32>, vector<4x128xf32>, vector<16x128xf32> -> vector<16x128xf32>
    %180 = arith.addf %163, %179 : vector<16x128xf32>
    %c0_52 = arith.constant 0 : index
    %c0_53 = arith.constant 0 : index
    %181 = vector.load %arg9[%c0_52, %c0_53] : memref<16x128xf32, #tpu.memory_space<vmem>>, vector<16x128xf32>
    tpu.vector_store %arg9[%c0_52, %c0_53], %180 {strides = array<i32>} : memref<16x128xf32, #tpu.memory_space<vmem>>, vector<16x128xf32>,
    %c0_54 = arith.constant 0 : index
    %c0_55 = arith.constant 0 : index
    %182 = vector.load %arg5[%c0_54, %c0_55] : memref<32x32xf32, #tpu.memory_space<vmem>>, vector<32x32xf32>
    %cst_56 = arith.constant dense<0.000000e+00> : vector<16x32xf32>
    %183 = tpu.matmul %111, %182, %cst_56 {dimension_numbers = #tpu.dot_dimension_numbers<[1], [0], [0], [1], [0, 0, 1, 1], [], []>} : vector<16x32xf32>, vector<32x32xf32>, vector<16x32xf32> -> vector<16x32xf32>
    %c0_57 = arith.constant 0 : index
    %c0_58 = arith.constant 0 : index
    %184 = vector.load %arg7[%c0_57, %c0_58] : memref<1x32xf32, #tpu.memory_space<vmem>>, vector<1x32xf32>
    %185 = vector.broadcast %184 : vector<1x32xf32> to vector<16x32xf32>
    %186 = arith.addf %183, %185 : vector<16x32xf32>
    %c0_59 = arith.constant 0 : index
    %c0_60 = arith.constant 0 : index
    %187 = vector.load %arg8[%c0_59, %c0_60] : memref<16x32xf32, #tpu.memory_space<vmem>>, vector<16x32xf32>
    tpu.vector_store %arg8[%c0_59, %c0_60], %186 {strides = array<i32>} : memref<16x32xf32, #tpu.memory_space<vmem>>, vector<16x32xf32>,
    return
  }
  func.func @transform_0(%arg0: i32) -> (i32, i32) {
    %c0_i32 = arith.constant 0 : i32
    %c0_i32_0 = arith.constant 0 : i32
    return %arg0, %c0_i32 : i32, i32
  }
  func.func @transform_1(%arg0: i32) -> (i32, i32) {
    %c0_i32 = arith.constant 0 : i32
    %c0_i32_0 = arith.constant 0 : i32
    return %arg0, %c0_i32 : i32, i32
  }
  func.func @transform_2(%arg0: i32) -> (i32, i32) {
    %c0_i32 = arith.constant 0 : i32
    %c0_i32_0 = arith.constant 0 : i32
    return %arg0, %c0_i32 : i32, i32
  }
  func.func @transform_3(%arg0: i32) -> (i32, i32, i32) {
    %c0_i32 = arith.constant 0 : i32
    %c0_i32_0 = arith.constant 0 : i32
    %c0_i32_1 = arith.constant 0 : i32
    %c0_i32_2 = arith.constant 0 : i32
    return %c0_i32, %c0_i32_0, %c0_i32_1 : i32, i32, i32
  }
  func.func @transform_4(%arg0: i32) -> (i32, i32) {
    %c0_i32 = arith.constant 0 : i32
    %c0_i32_0 = arith.constant 0 : i32
    %c0_i32_1 = arith.constant 0 : i32
    return %c0_i32, %c0_i32_0 : i32, i32
  }
  func.func @transform_5(%arg0: i32) -> (i32, i32) {
    %c0_i32 = arith.constant 0 : i32
    %c0_i32_0 = arith.constant 0 : i32
    %c0_i32_1 = arith.constant 0 : i32
    return %c0_i32, %c0_i32_0 : i32, i32
  }
  func.func @transform_6(%arg0: i32) -> (i32, i32) {
    %c0_i32 = arith.constant 0 : i32
    %c0_i32_0 = arith.constant 0 : i32
    %c0_i32_1 = arith.constant 0 : i32
    return %c0_i32, %c0_i32_0 : i32, i32
  }
  func.func @transform_7(%arg0: i32) -> (i32, i32) {
    %c0_i32 = arith.constant 0 : i32
    %c0_i32_0 = arith.constant 0 : i32
    return %arg0, %c0_i32 : i32, i32
  }
  func.func @transform_8(%arg0: i32) -> (i32, i32) {
    %c0_i32 = arith.constant 0 : i32
    %c0_i32_0 = arith.constant 0 : i32
    return %arg0, %c0_i32 : i32, i32
  }
}

</mosaic_0001>

<llo_original>
// kernel: tpu_custom_call.1
$region0: #{tpu_custom_call.1}
  #allocation0 [shape = 'u32[]', space=smem, size = 0x4, offset = 0x4, fixed_abs, tag = 'smem constant byte address 0x4 - core index']
  #allocation1 [shape = 'u32[144,128]{1,0:T(1,128)}', space=vmem, size = 0x12000, scoped, tag = 'internal scratch']
  %s0 = inlined_call_operand.hbm [shape: f32[16,32], index: 0, kind: input, shape index: {}]
  %s1 = inlined_call_operand.hbm [shape: f32[16,32], index: 1, kind: input, shape index: {}]
  %s2 = inlined_call_operand.hbm [shape: f32[16,32], index: 2, kind: input, shape index: {}]
  %s3 = inlined_call_operand.hbm [shape: f32[3,32,32], index: 3, kind: input, shape index: {}]
  %s4 = inlined_call_operand.hbm [shape: f32[32,32], index: 4, kind: input, shape index: {}]
  %s5 = inlined_call_operand.vmem [shape: f32[3,32], index: 5, kind: input, shape index: {}]
  %s6 = inlined_call_operand.vmem [shape: f32[1,32], index: 6, kind: input, shape index: {}]
  %s7 = inlined_call_operand.hbm [shape: f32[16,32], index: 7, kind: output, shape index: {0}]
  %s8 = inlined_call_operand.hbm [shape: f32[16,128], index: 8, kind: output, shape index: {1}]
  %9 = xla_tuple %s7, %s8
  %s10 = sld [smem:[#allocation0]]
  $region66: #{tpu_custom_call.1} parent=0
    _
  %s12 = ssub.s32 1, %s10
  %s13 = scalar_select 0, %s12, %s10
  $region1: #{tpu_custom_call.1} parent=0
    #allocation2 [shape = 'u8[8192]{0}', space=vmem, size = 0x2000, scoped, tag = 'input window, operand 0, single buffered']
    #allocation3 [shape = 's32[1]{0}', space=sflag, size = 0x4, scoped, tag = 'scoped memory for tpu_custom_call.1']
    #allocation4 [shape = 's32[1]{0}', space=sflag, size = 0x4, scoped, tag = 'scoped memory for tpu_custom_call.1']
    #allocation5 [shape = 'u8[8192]{0}', space=vmem, size = 0x2000, scoped, tag = 'input window, operand 1, single buffered']
    #allocation6 [shape = 's32[1]{0}', space=sflag, size = 0x4, scoped, tag = 'scoped memory for tpu_custom_call.1']
    #allocation7 [shape = 'u8[8192]{0}', space=vmem, size = 0x2000, scoped, tag = 'input window, operand 2, single buffered']
    #allocation8 [shape = 'u8[49152]{0}', space=vmem, size = 0xc000, scoped, tag = 'input window, operand 3, single buffered']
    #allocation9 [shape = 's32[1]{0}', space=sflag, size = 0x4, scoped, tag = 'scoped memory for tpu_custom_call.1']
    #allocation10 [shape = 'u8[16384]{0}', space=vmem, size = 0x4000, scoped, tag = 'input window, operand 4, single buffered']
    #allocation11 [shape = 'u8[8192]{0}', space=vmem, size = 0x2000, scoped, tag = 'output window, operand 0, single buffered']
    #allocation12 [shape = 'u8[8192]{0}', space=vmem, size = 0x2000, scoped, tag = 'output window, operand 1, single buffered']
    #allocation13 [shape = 's32[1]{0}', space=sflag, size = 0x4, scoped, tag = 'scoped memory for tpu_custom_call.1']
    %14 = vsyncpa [#allocation3], 0
    %15 = vsyncpa [#allocation6], 0
    %16 = vsyncpa [#allocation9], 0
    %17 = vsyncpa [#allocation4], 0
    %18 = vsyncpa [#allocation13], 0
    // Predicated region
    $region2: #{tpu_custom_call.1} parent=1 // pred_check
      _
    $region3: #{tpu_custom_call.1} parent=1 // pred_check_branch
      %20 = sbr.rel (0) target = $region5
    $region4: #{tpu_custom_call.1} parent=1 // pred_region
      %s22 = ssub.s32 256, 256
      %23 = vsyncadd [#allocation3], %s22
      %s24 = sshll.u32 [#allocation2], 4
      %s25 = int_to_ptr.vmem [resolvable:$true] %s24
      %30 = dma.hbm_to_vmem [thread:$0]  %s0, 256, %s25, [#allocation3], 128, 128, 8
    $region5: #{tpu_custom_call.1} parent=1 // pred_fallthru
      _
    // Predicated region
    $region6: #{tpu_custom_call.1} parent=1 // pred_check
      _
    $region7: #{tpu_custom_call.1} parent=1 // pred_check_branch
      %32 = sbr.rel (0) target = $region9
    $region8: #{tpu_custom_call.1} parent=1 // pred_region
      %s34 = ssub.s32 256, 256
      %35 = vsyncadd [#allocation6], %s34
      %s36 = sshll.u32 [#allocation5], 4
      %s37 = int_to_ptr.vmem [resolvable:$true] %s36
      %42 = dma.hbm_to_vmem [thread:$0]  %s1, 256, %s37, [#allocation6], 128, 128, 8
    $region9: #{tpu_custom_call.1} parent=1 // pred_fallthru
      _
    // Predicated region
    $region10: #{tpu_custom_call.1} parent=1 // pred_check
      _
    $region11: #{tpu_custom_call.1} parent=1 // pred_check_branch
      %44 = sbr.rel (0) target = $region13
    $region12: #{tpu_custom_call.1} parent=1 // pred_region
      %s46 = ssub.s32 256, 256
      %47 = vsyncadd [#allocation6], %s46
      %s48 = sshll.u32 [#allocation7], 4
      %s49 = int_to_ptr.vmem [resolvable:$true] %s48
      %54 = dma.hbm_to_vmem [thread:$0]  %s2, 256, %s49, [#allocation6], 128, 128, 8
    $region13: #{tpu_custom_call.1} parent=1 // pred_fallthru
      _
    // Predicated region
    $region14: #{tpu_custom_call.1} parent=1 // pred_check
      _
    $region15: #{tpu_custom_call.1} parent=1 // pred_check_branch
      %56 = sbr.rel (0) target = $region17
    $region16: #{tpu_custom_call.1} parent=1 // pred_region
      %s58 = ssub.s32 1536, 1536
      %59 = vsyncadd [#allocation9], %s58
      %s60 = sshll.u32 [#allocation8], 4
      %s61 = int_to_ptr.vmem [resolvable:$true] %s60
      %66 = dma.hbm_to_vmem [thread:$0]  %s3, 1536, %s61, [#allocation9], 128, 128, 8
    $region17: #{tpu_custom_call.1} parent=1 // pred_fallthru
      _
    // Predicated region
    $region18: #{tpu_custom_call.1} parent=1 // pred_check
      _
    $region19: #{tpu_custom_call.1} parent=1 // pred_check_branch
      %68 = sbr.rel (0) target = $region21
    $region20: #{tpu_custom_call.1} parent=1 // pred_region
      %s70 = ssub.s32 512, 512
      %71 = vsyncadd [#allocation9], %s70
      %s72 = sshll.u32 [#allocation10], 4
      %s73 = int_to_ptr.vmem [resolvable:$true] %s72
      %78 = dma.hbm_to_vmem [thread:$0]  %s4, 512, %s73, [#allocation9], 128, 128, 8
    $region21: #{tpu_custom_call.1} parent=1 // pred_fallthru
      _
    // Predicated region
    $region22: #{tpu_custom_call.1} parent=1 // pred_check
      _
    $region23: #{tpu_custom_call.1} parent=1 // pred_check_branch
      %80 = sbr.rel (0) target = $region25
    $region24: #{tpu_custom_call.1} parent=1 // pred_region
      _
    $region25: #{tpu_custom_call.1} parent=1 // pred_fallthru
      _
    // Predicated region
    $region26: #{tpu_custom_call.1} parent=1 // pred_check
      _
    $region27: #{tpu_custom_call.1} parent=1 // pred_check_branch
      %82 = sbr.rel (0) target = $region29
    $region28: #{tpu_custom_call.1} parent=1 // pred_region
      _
    $region29: #{tpu_custom_call.1} parent=1 // pred_fallthru
      _
    // Predicated region
    $region30: #{tpu_custom_call.1} parent=1 // pred_check
      _
    $region31: #{tpu_custom_call.1} parent=1 // pred_check_branch
      %84 = sbr.rel (0) target = $region33
    $region32: #{tpu_custom_call.1} parent=1 // pred_region
      %85 = dma.done [#allocation3], 256
    $region33: #{tpu_custom_call.1} parent=1 // pred_fallthru
      _
    // Predicated region
    $region34: #{tpu_custom_call.1} parent=1 // pred_check
      _
    $region35: #{tpu_custom_call.1} parent=1 // pred_check_branch
      %87 = sbr.rel (0) target = $region37
    $region36: #{tpu_custom_call.1} parent=1 // pred_region
      %88 = dma.done [#allocation6], 256
    $region37: #{tpu_custom_call.1} parent=1 // pred_fallthru
      _
    // Predicated region
    $region38: #{tpu_custom_call.1} parent=1 // pred_check
      _
    $region39: #{tpu_custom_call.1} parent=1 // pred_check_branch
      %90 = sbr.rel (0) target = $region41
    $region40: #{tpu_custom_call.1} parent=1 // pred_region
      %91 = dma.done [#allocation6], 256
    $region41: #{tpu_custom_call.1} parent=1 // pred_fallthru
      _
    // Predicated region
    $region42: #{tpu_custom_call.1} parent=1 // pred_check
      _
    $region43: #{tpu_custom_call.1} parent=1 // pred_check_branch
      %93 = sbr.rel (0) target = $region45
    $region44: #{tpu_custom_call.1} parent=1 // pred_region
      %94 = dma.done [#allocation9], 1536
    $region45: #{tpu_custom_call.1} parent=1 // pred_fallthru
      _
    // Predicated region
    $region46: #{tpu_custom_call.1} parent=1 // pred_check
      _
    $region47: #{tpu_custom_call.1} parent=1 // pred_check_branch
      %96 = sbr.rel (0) target = $region49
    $region48: #{tpu_custom_call.1} parent=1 // pred_region
      %97 = dma.done [#allocation9], 512
    $region49: #{tpu_custom_call.1} parent=1 // pred_fallthru
      _
    %v98 = vld [vmem:[%s5] sm:$0x7]
    %v99 = vld [vmem:[#allocation2] sm:$0xff]
    %v100 = vld [vmem:[#allocation2 + $0x8] sm:$0xff]
    %v101 = vld [vmem:[#allocation8] sm:$0xff]
    %v102 = vld [vmem:[#allocation8 + $0x8] sm:$0xff]
    %v103 = vld [vmem:[#allocation8 + $0x10] sm:$0xff]
    %v104 = vld [vmem:[#allocation8 + $0x18] sm:$0xff]
    %v105 = vlaneseq
    %v106 = vshrl.u32 %v105, 7
    %v107 = vsub.s32 0, %v106
    %v108 = vrot.slane %v98, %v107
    %vm109 = vcmask 261120
    %v111 = vsel %vm109, %v99, 0
    %v114 = vsel %vm109, %v100, 0
    %116 = vmatprep.subr.mxu0 0.0
    %117 = vmatpush1.msra.mxu0 %v101
    %118 = vmatprep.subr.mxu0 0.0
    %119 = vmatpush1.msra.mxu0 %v102
    %120 = vmatprep.subr.mxu0 0.0
    %121 = vmatpush1.msra.mxu0 %v103
    %122 = vmatprep.subr.mxu0 0.0
    %123 = vmatpush1.msra.mxu0 %v104
    %124 = vmatprep.subr.mxu0 0.0
    %125 = vmatpush1.msra.mxu0 0.0
    %126 = vmatprep.subr.mxu0 0.0
    %127 = vmatpush1.msra.mxu0 0.0
    %128 = vmatprep.subr.mxu0 0.0
    %129 = vmatpush1.msra.mxu0 0.0
    %130 = vmatprep.subr.mxu0 0.0
    %131 = vmatpush1.msra.mxu0 0.0
    %132 = vmatprep.subr.mxu0 0.0
    %133 = vmatpush1.msra.mxu0 0.0
    %134 = vmatprep.subr.mxu0 0.0
    %135 = vmatpush1.msra.mxu0 0.0
    %136 = vmatprep.subr.mxu0 0.0
    %137 = vmatpush1.msra.mxu0 0.0
    %138 = vmatprep.subr.mxu0 0.0
    %139 = vmatpush1.msra.mxu0 0.0
    %140 = vmatprep.subr.mxu0 0.0
    %141 = vmatpush1.msra.mxu0 0.0
    %142 = vmatprep.subr.mxu0 0.0
    %143 = vmatpush1.msra.mxu0 0.0
    %144 = vmatprep.subr.mxu0 0.0
    %145 = vmatpush1.msra.mxu0 0.0
    %146 = vmatprep.subr.mxu0 0.0
    %147 = vmatpush1.msra.mxu0 0.0
    %148 = vmatprep.subr.mxu0 0.0
    %149 = vmatpush1.msra.mxu0 0.0
    %150 = vmatprep.subr.mxu0 0.0
    %151 = vmatpush1.msra.mxu0 0.0
    %152 = vmatprep.subr.mxu0 0.0
    %153 = vmatpush1.msra.mxu0 0.0
    %154 = vmatprep.subr.mxu0 0.0
    %155 = vmatpush1.msra.mxu0 0.0
    %156 = vmatprep.subr.mxu0 0.0
    %157 = vmatpush1.msra.mxu0 0.0
    %158 = vmatprep.subr.mxu0 0.0
    %159 = vmatpush1.msra.mxu0 0.0
    %160 = vmatprep.subr.mxu0 0.0
    %161 = vmatpush1.msra.mxu0 0.0
    %162 = vmatprep.subr.mxu0 0.0
    %163 = vmatpush1.msra.mxu0 0.0
    %164 = vmatprep.subr.mxu0 0.0
    %165 = vmatpush1.msra.mxu0 0.0
    %166 = vmatprep.subr.mxu0 0.0
    %167 = vmatpush1.msra.mxu0 0.0
    %168 = vmatprep.subr.mxu0 0.0
    %169 = vmatpush1.msra.mxu0 0.0
    %170 = vmatprep.subr.mxu0 0.0
    %171 = vmatpush1.msra.mxu0 0.0
    %172 = vmatprep.subr.mxu0 0.0
    %173 = vmatpush1.msra.mxu0 0.0
    %174 = vmatprep.subr.mxu0 0.0
    %175 = vmatpush1.msra.mxu0 0.0
    %176 = vmatprep.subr.mxu0 0.0
    %177 = vmatpush1.msra.mxu0 0.0
    %178 = vmatprep.subr.mxu0 0.0
    %179 = vmatpush1.msra.mxu0 0.0
    %180 = vmatprep.mubr.f32.mxu0 0.0
    %181 = vmatmul.mubr.f32.gmra.mrb[0].mxu0 %v111
    %v182 = vpop.f32.mrb[0].mxu0
    %v183 = vadd.f32 %v108, %v182
    %v184 = vpop.f32.mrb[0].mxu0
    %185 = vmatprep.mubr.f32.mxu0 0.0
    %186 = vmatmul.mubr.f32.gmra.mrb[0].mxu0 %v114
    %v187 = vpop.f32.mrb[0].mxu0
    %v188 = vadd.f32 %v108, %v187
    %v189 = vpop.f32.mrb[0].mxu0
    %190 = vdwg.mxu0
    %v191 = vld [vmem:[#allocation5] sm:$0xff]
    %v192 = vld [vmem:[#allocation5 + $0x8] sm:$0xff]
    %s193 = scalar_lea.vmem [#allocation8], 32
    %v194 = vld [vmem:[%s193] sm:$0xff]
    %v195 = vld [vmem:[%s193 + $0x8] sm:$0xff]
    %v196 = vld [vmem:[%s193 + $0x10] sm:$0xff]
    %v197 = vld [vmem:[%s193 + $0x18] sm:$0xff]
    %v198 = vlaneseq
    %v199 = vshrl.u32 %v198, 7
    %v200 = vsub.s32 1, %v199
    %v201 = vrot.slane %v98, %v200
    %v203 = vsel %vm109, %v191, 0
    %v206 = vsel %vm109, %v192, 0
    %208 = vmatprep.subr.mxu0 0.0
    %209 = vmatpush1.msra.mxu0 %v194
    %210 = vmatprep.subr.mxu0 0.0
    %211 = vmatpush1.msra.mxu0 %v195
    %212 = vmatprep.subr.mxu0 0.0
    %213 = vmatpush1.msra.mxu0 %v196
    %214 = vmatprep.subr.mxu0 0.0
    %215 = vmatpush1.msra.mxu0 %v197
    %216 = vmatprep.subr.mxu0 0.0
    %217 = vmatpush1.msra.mxu0 0.0
    %218 = vmatprep.subr.mxu0 0.0
    %219 = vmatpush1.msra.mxu0 0.0
    %220 = vmatprep.subr.mxu0 0.0
    %221 = vmatpush1.msra.mxu0 0.0
    %222 = vmatprep.subr.mxu0 0.0
    %223 = vmatpush1.msra.mxu0 0.0
    %224 = vmatprep.subr.mxu0 0.0
    %225 = vmatpush1.msra.mxu0 0.0
    %226 = vmatprep.subr.mxu0 0.0
    %227 = vmatpush1.msra.mxu0 0.0
    %228 = vmatprep.subr.mxu0 0.0
    %229 = vmatpush1.msra.mxu0 0.0
    %230 = vmatprep.subr.mxu0 0.0
    %231 = vmatpush1.msra.mxu0 0.0
    %232 = vmatprep.subr.mxu0 0.0
    %233 = vmatpush1.msra.mxu0 0.0
    %234 = vmatprep.subr.mxu0 0.0
    %235 = vmatpush1.msra.mxu0 0.0
    %236 = vmatprep.subr.mxu0 0.0
    %237 = vmatpush1.msra.mxu0 0.0
    %238 = vmatprep.subr.mxu0 0.0
    %239 = vmatpush1.msra.mxu0 0.0
    %240 = vmatprep.subr.mxu0 0.0
    %241 = vmatpush1.msra.mxu0 0.0
    %242 = vmatprep.subr.mxu0 0.0
    %243 = vmatpush1.msra.mxu0 0.0
    %244 = vmatprep.subr.mxu0 0.0
    %245 = vmatpush1.msra.mxu0 0.0
    %246 = vmatprep.subr.mxu0 0.0
    %247 = vmatpush1.msra.mxu0 0.0
    %248 = vmatprep.subr.mxu0 0.0
    %249 = vmatpush1.msra.mxu0 0.0
    %250 = vmatprep.subr.mxu0 0.0
    %251 = vmatpush1.msra.mxu0 0.0
    %252 = vmatprep.subr.mxu0 0.0
    %253 = vmatpush1.msra.mxu0 0.0
    %254 = vmatprep.subr.mxu0 0.0
    %255 = vmatpush1.msra.mxu0 0.0
    %256 = vmatprep.subr.mxu0 0.0
    %257 = vmatpush1.msra.mxu0 0.0
    %258 = vmatprep.subr.mxu0 0.0
    %259 = vmatpush1.msra.mxu0 0.0
    %260 = vmatprep.subr.mxu0 0.0
    %261 = vmatpush1.msra.mxu0 0.0
    %262 = vmatprep.subr.mxu0 0.0
    %263 = vmatpush1.msra.mxu0 0.0
    %264 = vmatprep.subr.mxu0 0.0
    %265 = vmatpush1.msra.mxu0 0.0
    %266 = vmatprep.subr.mxu0 0.0
    %267 = vmatpush1.msra.mxu0 0.0
    %268 = vmatprep.subr.mxu0 0.0
    %269 = vmatpush1.msra.mxu0 0.0
    %270 = vmatprep.subr.mxu0 0.0
    %271 = vmatpush1.msra.mxu0 0.0
    %272 = vmatprep.mubr.f32.mxu0 0.0
    %273 = vmatmul.mubr.f32.gmra.mrb[0].mxu0 %v203
    %v274 = vpop.f32.mrb[0].mxu0
    %v275 = vadd.f32 %v201, %v274
    %v276 = vpop.f32.mrb[0].mxu0
    %277 = vmatprep.mubr.f32.mxu0 0.0
    %278 = vmatmul.mubr.f32.gmra.mrb[0].mxu0 %v206
    %v279 = vpop.f32.mrb[0].mxu0
    %v280 = vadd.f32 %v201, %v279
    %v281 = vpop.f32.mrb[0].mxu0
    %282 = vdwg.mxu0
    %v283 = vld [vmem:[#allocation7] sm:$0xff]
    %v284 = vld [vmem:[#allocation7 + $0x8] sm:$0xff]
    %s285 = scalar_lea.vmem [#allocation8], 64
    %v286 = vld [vmem:[%s285] sm:$0xff]
    %v287 = vld [vmem:[%s285 + $0x8] sm:$0xff]
    %v288 = vld [vmem:[%s285 + $0x10] sm:$0xff]
    %v289 = vld [vmem:[%s285 + $0x18] sm:$0xff]
    %v290 = vlaneseq
    %v291 = vshrl.u32 %v290, 7
    %v292 = vsub.s32 2, %v291
    %v293 = vrot.slane %v98, %v292
    %v295 = vsel %vm109, %v283, 0
    %v298 = vsel %vm109, %v284, 0
    %300 = vmatprep.subr.mxu0 0.0
    %301 = vmatpush1.msra.mxu0 %v286
    %302 = vmatprep.subr.mxu0 0.0
    %303 = vmatpush1.msra.mxu0 %v287
    %304 = vmatprep.subr.mxu0 0.0
    %305 = vmatpush1.msra.mxu0 %v288
    %306 = vmatprep.subr.mxu0 0.0
    %307 = vmatpush1.msra.mxu0 %v289
    %308 = vmatprep.subr.mxu0 0.0
    %309 = vmatpush1.msra.mxu0 0.0
    %310 = vmatprep.subr.mxu0 0.0
    %311 = vmatpush1.msra.mxu0 0.0
    %312 = vmatprep.subr.mxu0 0.0
    %313 = vmatpush1.msra.mxu0 0.0
    %314 = vmatprep.subr.mxu0 0.0
    %315 = vmatpush1.msra.mxu0 0.0
    %316 = vmatprep.subr.mxu0 0.0
    %317 = vmatpush1.msra.mxu0 0.0
    %318 = vmatprep.subr.mxu0 0.0
    %319 = vmatpush1.msra.mxu0 0.0
    %320 = vmatprep.subr.mxu0 0.0
    %321 = vmatpush1.msra.mxu0 0.0
    %322 = vmatprep.subr.mxu0 0.0
    %323 = vmatpush1.msra.mxu0 0.0
    %324 = vmatprep.subr.mxu0 0.0
    %325 = vmatpush1.msra.mxu0 0.0
    %326 = vmatprep.subr.mxu0 0.0
    %327 = vmatpush1.msra.mxu0 0.0
    %328 = vmatprep.subr.mxu0 0.0
    %329 = vmatpush1.msra.mxu0 0.0
    %330 = vmatprep.subr.mxu0 0.0
    %331 = vmatpush1.msra.mxu0 0.0
    %332 = vmatprep.subr.mxu0 0.0
    %333 = vmatpush1.msra.mxu0 0.0
    %334 = vmatprep.subr.mxu0 0.0
    %335 = vmatpush1.msra.mxu0 0.0
    %336 = vmatprep.subr.mxu0 0.0
    %337 = vmatpush1.msra.mxu0 0.0
    %338 = vmatprep.subr.mxu0 0.0
    %339 = vmatpush1.msra.mxu0 0.0
    %340 = vmatprep.subr.mxu0 0.0
    %341 = vmatpush1.msra.mxu0 0.0
    %342 = vmatprep.subr.mxu0 0.0
    %343 = vmatpush1.msra.mxu0 0.0
    %344 = vmatprep.subr.mxu0 0.0
    %345 = vmatpush1.msra.mxu0 0.0
    %346 = vmatprep.subr.mxu0 0.0
    %347 = vmatpush1.msra.mxu0 0.0
    %348 = vmatprep.subr.mxu0 0.0
    %349 = vmatpush1.msra.mxu0 0.0
    %350 = vmatprep.subr.mxu0 0.0
    %351 = vmatpush1.msra.mxu0 0.0
    %352 = vmatprep.subr.mxu0 0.0
    %353 = vmatpush1.msra.mxu0 0.0
    %354 = vmatprep.subr.mxu0 0.0
    %355 = vmatpush1.msra.mxu0 0.0
    %356 = vmatprep.subr.mxu0 0.0
    %357 = vmatpush1.msra.mxu0 0.0
    %358 = vmatprep.subr.mxu0 0.0
    %359 = vmatpush1.msra.mxu0 0.0
    %360 = vmatprep.subr.mxu0 0.0
    %361 = vmatpush1.msra.mxu0 0.0
    %362 = vmatprep.subr.mxu0 0.0
    %363 = vmatpush1.msra.mxu0 0.0
    %364 = vmatprep.mubr.f32.mxu0 0.0
    %365 = vmatmul.mubr.f32.gmra.mrb[0].mxu0 %v295
    %v366 = vpop.f32.mrb[0].mxu0
    %v367 = vadd.f32 %v293, %v366
    %v368 = vpop.f32.mrb[0].mxu0
    %369 = vmatprep.mubr.f32.mxu0 0.0
    %370 = vmatmul.mubr.f32.gmra.mrb[0].mxu0 %v298
    %v371 = vpop.f32.mrb[0].mxu0
    %v372 = vadd.f32 %v293, %v371
    %v373 = vpop.f32.mrb[0].mxu0
    %374 = vdwg.mxu0
    %v375 = vlaneseq
    %v376 = vshrl.u32 %v375, 7
    %v377 = vadd.s32 %v376, 8
    %v378 = vadd.s32 %v376, 16
    %v379 = vadd.s32 %v376, 24
    %v380 = vlaneseq
    %v381 = vand.u32 %v380, 127
    %v382 = vmul.u32 %v381, 8
    %vm383 = vcmp.ge.s32.totalorder %v376, %v382
    %vm384 = vcmp.ge.s32.totalorder %v377, %v382
    %vm385 = vcmp.ge.s32.totalorder %v378, %v382
    %vm386 = vcmp.ge.s32.totalorder %v379, %v382
    %v387 = vadd.s32 %v381, 1
    %v388 = vmul.u32 %v387, 8
    %vm389 = vcmp.lt.s32.totalorder %v376, %v388
    %vm390 = vcmp.lt.s32.totalorder %v377, %v388
    %vm391 = vcmp.lt.s32.totalorder %v378, %v388
    %vm392 = vcmp.lt.s32.totalorder %v379, %v388
    %vm393 = vmand %vm383, %vm389
    %vm394 = vmand %vm384, %vm390
    %vm395 = vmand %vm385, %vm391
    %vm396 = vmand %vm386, %vm392
    %v397 = vsel %vm393, 1, 0
    %v398 = vsel %vm394, 1, 0
    %v399 = vsel %vm395, 1, 0
    %v400 = vsel %vm396, 1, 0
    %v401 = vcvt.s32.f32 %v397
    %v402 = vcvt.s32.f32 %v398
    %v403 = vcvt.s32.f32 %v399
    %v404 = vcvt.s32.f32 %v400
    %v405 = vmul.u32 %v376, 8
    %vm406 = vcmp.ge.s32.totalorder %v381, %v405
    %v407 = vadd.s32 %v376, 1
    %v408 = vmul.u32 %v407, 8
    %vm409 = vcmp.lt.s32.totalorder %v381, %v408
    %vm410 = vmand %vm406, %vm409
    %v411 = vsel %vm410, 1, 0
    %v412 = vcvt.s32.f32 %v411
    %v413 = vmul.f32 %v183, %v275
    %v414 = vmul.f32 %v188, %v280
    %v416 = vsel %vm109, %v413, 0
    %v419 = vsel %vm109, %v414, 0
    %421 = vmatprep.subr.mxu0 0.0
    %422 = vmatpush1.msra.mxu0 %v401
    %423 = vmatprep.subr.mxu0 0.0
    %424 = vmatpush1.msra.mxu0 %v402
    %425 = vmatprep.subr.mxu0 0.0
    %426 = vmatpush1.msra.mxu0 %v403
    %427 = vmatprep.subr.mxu0 0.0
    %428 = vmatpush1.msra.mxu0 %v404
    %429 = vmatprep.subr.mxu0 0.0
    %430 = vmatpush1.msra.mxu0 0.0
    %431 = vmatprep.subr.mxu0 0.0
    %432 = vmatpush1.msra.mxu0 0.0
    %433 = vmatprep.subr.mxu0 0.0
    %434 = vmatpush1.msra.mxu0 0.0
    %435 = vmatprep.subr.mxu0 0.0
    %436 = vmatpush1.msra.mxu0 0.0
    %437 = vmatprep.subr.mxu0 0.0
    %438 = vmatpush1.msra.mxu0 0.0
    %439 = vmatprep.subr.mxu0 0.0
    %440 = vmatpush1.msra.mxu0 0.0
    %441 = vmatprep.subr.mxu0 0.0
    %442 = vmatpush1.msra.mxu0 0.0
    %443 = vmatprep.subr.mxu0 0.0
    %444 = vmatpush1.msra.mxu0 0.0
    %445 = vmatprep.subr.mxu0 0.0
    %446 = vmatpush1.msra.mxu0 0.0
    %447 = vmatprep.subr.mxu0 0.0
    %448 = vmatpush1.msra.mxu0 0.0
    %449 = vmatprep.subr.mxu0 0.0
    %450 = vmatpush1.msra.mxu0 0.0
    %451 = vmatprep.subr.mxu0 0.0
    %452 = vmatpush1.msra.mxu0 0.0
    %453 = vmatprep.subr.mxu0 0.0
    %454 = vmatpush1.msra.mxu0 0.0
    %455 = vmatprep.subr.mxu0 0.0
    %456 = vmatpush1.msra.mxu0 0.0
    %457 = vmatprep.subr.mxu0 0.0
    %458 = vmatpush1.msra.mxu0 0.0
    %459 = vmatprep.subr.mxu0 0.0
    %460 = vmatpush1.msra.mxu0 0.0
    %461 = vmatprep.subr.mxu0 0.0
    %462 = vmatpush1.msra.mxu0 0.0
    %463 = vmatprep.subr.mxu0 0.0
    %464 = vmatpush1.msra.mxu0 0.0
    %465 = vmatprep.subr.mxu0 0.0
    %466 = vmatpush1.msra.mxu0 0.0
    %467 = vmatprep.subr.mxu0 0.0
    %468 = vmatpush1.msra.mxu0 0.0
    %469 = vmatprep.subr.mxu0 0.0
    %470 = vmatpush1.msra.mxu0 0.0
    %471 = vmatprep.subr.mxu0 0.0
    %472 = vmatpush1.msra.mxu0 0.0
    %473 = vmatprep.subr.mxu0 0.0
    %474 = vmatpush1.msra.mxu0 0.0
    %475 = vmatprep.subr.mxu0 0.0
    %476 = vmatpush1.msra.mxu0 0.0
    %477 = vmatprep.subr.mxu0 0.0
    %478 = vmatpush1.msra.mxu0 0.0
    %479 = vmatprep.subr.mxu0 0.0
    %480 = vmatpush1.msra.mxu0 0.0
    %481 = vmatprep.subr.mxu0 0.0
    %482 = vmatpush1.msra.mxu0 0.0
    %483 = vmatprep.subr.mxu0 0.0
    %484 = vmatpush1.msra.mxu0 0.0
    %485 = vmatprep.mubr.f32.mxu0 0.0
    %486 = vmatmul.mubr.f32.gmra.mrb[0].mxu0 %v416
    %v487 = vpop.f32.mrb[0].mxu0
    %v488 = vadd.f32 0.0, %v487
    %v489 = vpop.f32.mrb[0].mxu0
    %490 = vmatprep.mubr.f32.mxu0 0.0
    %491 = vmatmul.mubr.f32.gmra.mrb[0].mxu0 %v419
    %v492 = vpop.f32.mrb[0].mxu0
    %v493 = vadd.f32 0.0, %v492
    %v494 = vpop.f32.mrb[0].mxu0
    %495 = vdwg.mxu0
    %v496 = vmul.f32 %v488, 0.35355338
    %v497 = vmul.f32 %v493, 0.35355338
    %500 = vrot.lane.b32.xlu0 %v275, 104
    %v501 = vpop.permute.xlu0 %500
    %502 = vrot.lane.b32.xlu0 %v280, 104
    %v503 = vpop.permute.xlu0 %502
    %506 = vrot.lane.b32.xlu0 %v275, 8
    %v507 = vpop.permute.xlu0 %506
    %508 = vrot.lane.b32.xlu0 %v280, 8
    %v509 = vpop.permute.xlu0 %508
    %vm512 = vcmask 64512
    %v513 = vsel %vm512, %v501, %v507
    %v514 = vsel %vm512, %v503, %v509
    %v515 = vmul.f32 %v183, %v513
    %v516 = vmul.f32 %v188, %v514
    %v518 = vsel %vm109, %v515, 0
    %v521 = vsel %vm109, %v516, 0
    %523 = vmatprep.subr.mxu0 0.0
    %524 = vmatpush1.msra.mxu0 %v401
    %525 = vmatprep.subr.mxu0 0.0
    %526 = vmatpush1.msra.mxu0 %v402
    %527 = vmatprep.subr.mxu0 0.0
    %528 = vmatpush1.msra.mxu0 %v403
    %529 = vmatprep.subr.mxu0 0.0
    %530 = vmatpush1.msra.mxu0 %v404
    %531 = vmatprep.subr.mxu0 0.0
    %532 = vmatpush1.msra.mxu0 0.0
    %533 = vmatprep.subr.mxu0 0.0
    %534 = vmatpush1.msra.mxu0 0.0
    %535 = vmatprep.subr.mxu0 0.0
    %536 = vmatpush1.msra.mxu0 0.0
    %537 = vmatprep.subr.mxu0 0.0
    %538 = vmatpush1.msra.mxu0 0.0
    %539 = vmatprep.subr.mxu0 0.0
    %540 = vmatpush1.msra.mxu0 0.0
    %541 = vmatprep.subr.mxu0 0.0
    %542 = vmatpush1.msra.mxu0 0.0
    %543 = vmatprep.subr.mxu0 0.0
    %544 = vmatpush1.msra.mxu0 0.0
    %545 = vmatprep.subr.mxu0 0.0
    %546 = vmatpush1.msra.mxu0 0.0
    %547 = vmatprep.subr.mxu0 0.0
    %548 = vmatpush1.msra.mxu0 0.0
    %549 = vmatprep.subr.mxu0 0.0
    %550 = vmatpush1.msra.mxu0 0.0
    %551 = vmatprep.subr.mxu0 0.0
    %552 = vmatpush1.msra.mxu0 0.0
    %553 = vmatprep.subr.mxu0 0.0
    %554 = vmatpush1.msra.mxu0 0.0
    %555 = vmatprep.subr.mxu0 0.0
    %556 = vmatpush1.msra.mxu0 0.0
    %557 = vmatprep.subr.mxu0 0.0
    %558 = vmatpush1.msra.mxu0 0.0
    %559 = vmatprep.subr.mxu0 0.0
    %560 = vmatpush1.msra.mxu0 0.0
    %561 = vmatprep.subr.mxu0 0.0
    %562 = vmatpush1.msra.mxu0 0.0
    %563 = vmatprep.subr.mxu0 0.0
    %564 = vmatpush1.msra.mxu0 0.0
    %565 = vmatprep.subr.mxu0 0.0
    %566 = vmatpush1.msra.mxu0 0.0
    %567 = vmatprep.subr.mxu0 0.0
    %568 = vmatpush1.msra.mxu0 0.0
    %569 = vmatprep.subr.mxu0 0.0
    %570 = vmatpush1.msra.mxu0 0.0
    %571 = vmatprep.subr.mxu0 0.0
    %572 = vmatpush1.msra.mxu0 0.0
    %573 = vmatprep.subr.mxu0 0.0
    %574 = vmatpush1.msra.mxu0 0.0
    %575 = vmatprep.subr.mxu0 0.0
    %576 = vmatpush1.msra.mxu0 0.0
    %577 = vmatprep.subr.mxu0 0.0
    %578 = vmatpush1.msra.mxu0 0.0
    %579 = vmatprep.subr.mxu0 0.0
    %580 = vmatpush1.msra.mxu0 0.0
    %581 = vmatprep.subr.mxu0 0.0
    %582 = vmatpush1.msra.mxu0 0.0
    %583 = vmatprep.subr.mxu0 0.0
    %584 = vmatpush1.msra.mxu0 0.0
    %585 = vmatprep.subr.mxu0 0.0
    %586 = vmatpush1.msra.mxu0 0.0
    %587 = vmatprep.mubr.f32.mxu0 0.0
    %588 = vmatmul.mubr.f32.gmra.mrb[0].mxu0 %v518
    %v589 = vpop.f32.mrb[0].mxu0
    %v590 = vadd.f32 0.0, %v589
    %v591 = vpop.f32.mrb[0].mxu0
    %592 = vmatprep.mubr.f32.mxu0 0.0
    %593 = vmatmul.mubr.f32.gmra.mrb[0].mxu0 %v521
    %v594 = vpop.f32.mrb[0].mxu0
    %v595 = vadd.f32 0.0, %v594
    %v596 = vpop.f32.mrb[0].mxu0
    %597 = vdwg.mxu0
    %v598 = vmul.f32 %v590, 0.35355338
    %v599 = vmul.f32 %v595, 0.35355338
    %600 = vrot.lane.b32.xlu0 %v275, 112
    %v601 = vpop.permute.xlu0 %600
    %602 = vrot.lane.b32.xlu0 %v280, 112
    %v603 = vpop.permute.xlu0 %602
    %606 = vrot.lane.b32.xlu0 %v275, 16
    %v607 = vpop.permute.xlu0 %606
    %608 = vrot.lane.b32.xlu0 %v280, 16
    %v609 = vpop.permute.xlu0 %608
    %vm612 = vcmask 130048
    %v613 = vsel %vm612, %v601, %v607
    %v614 = vsel %vm612, %v603, %v609
    %v615 = vmul.f32 %v183, %v613
    %v616 = vmul.f32 %v188, %v614
    %v618 = vsel %vm109, %v615, 0
    %v621 = vsel %vm109, %v616, 0
    %623 = vmatprep.subr.mxu0 0.0
    %624 = vmatpush1.msra.mxu0 %v401
    %625 = vmatprep.subr.mxu0 0.0
    %626 = vmatpush1.msra.mxu0 %v402
    %627 = vmatprep.subr.mxu0 0.0
    %628 = vmatpush1.msra.mxu0 %v403
    %629 = vmatprep.subr.mxu0 0.0
    %630 = vmatpush1.msra.mxu0 %v404
    %631 = vmatprep.subr.mxu0 0.0
    %632 = vmatpush1.msra.mxu0 0.0
    %633 = vmatprep.subr.mxu0 0.0
    %634 = vmatpush1.msra.mxu0 0.0
    %635 = vmatprep.subr.mxu0 0.0
    %636 = vmatpush1.msra.mxu0 0.0
    %637 = vmatprep.subr.mxu0 0.0
    %638 = vmatpush1.msra.mxu0 0.0
    %639 = vmatprep.subr.mxu0 0.0
    %640 = vmatpush1.msra.mxu0 0.0
    %641 = vmatprep.subr.mxu0 0.0
    %642 = vmatpush1.msra.mxu0 0.0
    %643 = vmatprep.subr.mxu0 0.0
    %644 = vmatpush1.msra.mxu0 0.0
    %645 = vmatprep.subr.mxu0 0.0
    %646 = vmatpush1.msra.mxu0 0.0
    %647 = vmatprep.subr.mxu0 0.0
    %648 = vmatpush1.msra.mxu0 0.0
    %649 = vmatprep.subr.mxu0 0.0
    %650 = vmatpush1.msra.mxu0 0.0
    %651 = vmatprep.subr.mxu0 0.0
    %652 = vmatpush1.msra.mxu0 0.0
    %653 = vmatprep.subr.mxu0 0.0
    %654 = vmatpush1.msra.mxu0 0.0
    %655 = vmatprep.subr.mxu0 0.0
    %656 = vmatpush1.msra.mxu0 0.0
    %657 = vmatprep.subr.mxu0 0.0
    %658 = vmatpush1.msra.mxu0 0.0
    %659 = vmatprep.subr.mxu0 0.0
    %660 = vmatpush1.msra.mxu0 0.0
    %661 = vmatprep.subr.mxu0 0.0
    %662 = vmatpush1.msra.mxu0 0.0
    %663 = vmatprep.subr.mxu0 0.0
    %664 = vmatpush1.msra.mxu0 0.0
    %665 = vmatprep.subr.mxu0 0.0
    %666 = vmatpush1.msra.mxu0 0.0
    %667 = vmatprep.subr.mxu0 0.0
    %668 = vmatpush1.msra.mxu0 0.0
    %669 = vmatprep.subr.mxu0 0.0
    %670 = vmatpush1.msra.mxu0 0.0
    %671 = vmatprep.subr.mxu0 0.0
    %672 = vmatpush1.msra.mxu0 0.0
    %673 = vmatprep.subr.mxu0 0.0
    %674 = vmatpush1.msra.mxu0 0.0
    %675 = vmatprep.subr.mxu0 0.0
    %676 = vmatpush1.msra.mxu0 0.0
    %677 = vmatprep.subr.mxu0 0.0
    %678 = vmatpush1.msra.mxu0 0.0
    %679 = vmatprep.subr.mxu0 0.0
    %680 = vmatpush1.msra.mxu0 0.0
    %681 = vmatprep.subr.mxu0 0.0
    %682 = vmatpush1.msra.mxu0 0.0
    %683 = vmatprep.subr.mxu0 0.0
    %684 = vmatpush1.msra.mxu0 0.0
    %685 = vmatprep.subr.mxu0 0.0
    %686 = vmatpush1.msra.mxu0 0.0
    %687 = vmatprep.mubr.f32.mxu0 0.0
    %688 = vmatmul.mubr.f32.gmra.mrb[0].mxu0 %v618
    %v689 = vpop.f32.mrb[0].mxu0
    %v690 = vadd.f32 0.0, %v689
    %v691 = vpop.f32.mrb[0].mxu0
    %692 = vmatprep.mubr.f32.mxu0 0.0
    %693 = vmatmul.mubr.f32.gmra.mrb[0].mxu0 %v621
    %v694 = vpop.f32.mrb[0].mxu0
    %v695 = vadd.f32 0.0, %v694
    %v696 = vpop.f32.mrb[0].mxu0
    %697 = vdwg.mxu0
    %v698 = vmul.f32 %v690, 0.35355338
    %v699 = vmul.f32 %v695, 0.35355338
    %700 = vrot.lane.b32.xlu0 %v275, 120
    %v701 = vpop.permute.xlu0 %700
    %702 = vrot.lane.b32.xlu0 %v280, 120
    %v703 = vpop.permute.xlu0 %702
    %706 = vrot.lane.b32.xlu0 %v275, 24
    %v707 = vpop.permute.xlu0 %706
    %708 = vrot.lane.b32.xlu0 %v280, 24
    %v709 = vpop.permute.xlu0 %708
    %vm712 = vcmask 195584
    %v713 = vsel %vm712, %v701, %v707
    %v714 = vsel %vm712, %v703, %v709
    %v715 = vmul.f32 %v183, %v713
    %v716 = vmul.f32 %v188, %v714
    %v718 = vsel %vm109, %v715, 0
    %v721 = vsel %vm109, %v716, 0
    %723 = vmatprep.subr.mxu0 0.0
    %724 = vmatpush1.msra.mxu0 %v401
    %725 = vmatprep.subr.mxu0 0.0
    %726 = vmatpush1.msra.mxu0 %v402
    %727 = vmatprep.subr.mxu0 0.0
    %728 = vmatpush1.msra.mxu0 %v403
    %729 = vmatprep.subr.mxu0 0.0
    %730 = vmatpush1.msra.mxu0 %v404
    %731 = vmatprep.subr.mxu0 0.0
    %732 = vmatpush1.msra.mxu0 0.0
    %733 = vmatprep.subr.mxu0 0.0
    %734 = vmatpush1.msra.mxu0 0.0
    %735 = vmatprep.subr.mxu0 0.0
    %736 = vmatpush1.msra.mxu0 0.0
    %737 = vmatprep.subr.mxu0 0.0
    %738 = vmatpush1.msra.mxu0 0.0
    %739 = vmatprep.subr.mxu0 0.0
    %740 = vmatpush1.msra.mxu0 0.0
    %741 = vmatprep.subr.mxu0 0.0
    %742 = vmatpush1.msra.mxu0 0.0
    %743 = vmatprep.subr.mxu0 0.0
    %744 = vmatpush1.msra.mxu0 0.0
    %745 = vmatprep.subr.mxu0 0.0
    %746 = vmatpush1.msra.mxu0 0.0
    %747 = vmatprep.subr.mxu0 0.0
    %748 = vmatpush1.msra.mxu0 0.0
    %749 = vmatprep.subr.mxu0 0.0
    %750 = vmatpush1.msra.mxu0 0.0
    %751 = vmatprep.subr.mxu0 0.0
    %752 = vmatpush1.msra.mxu0 0.0
    %753 = vmatprep.subr.mxu0 0.0
    %754 = vmatpush1.msra.mxu0 0.0
    %755 = vmatprep.subr.mxu0 0.0
    %756 = vmatpush1.msra.mxu0 0.0
    %757 = vmatprep.subr.mxu0 0.0
    %758 = vmatpush1.msra.mxu0 0.0
    %759 = vmatprep.subr.mxu0 0.0
    %760 = vmatpush1.msra.mxu0 0.0
    %761 = vmatprep.subr.mxu0 0.0
    %762 = vmatpush1.msra.mxu0 0.0
    %763 = vmatprep.subr.mxu0 0.0
    %764 = vmatpush1.msra.mxu0 0.0
    %765 = vmatprep.subr.mxu0 0.0
    %766 = vmatpush1.msra.mxu0 0.0
    %767 = vmatprep.subr.mxu0 0.0
    %768 = vmatpush1.msra.mxu0 0.0
    %769 = vmatprep.subr.mxu0 0.0
    %770 = vmatpush1.msra.mxu0 0.0
    %771 = vmatprep.subr.mxu0 0.0
    %772 = vmatpush1.msra.mxu0 0.0
    %773 = vmatprep.subr.mxu0 0.0
    %774 = vmatpush1.msra.mxu0 0.0
    %775 = vmatprep.subr.mxu0 0.0
    %776 = vmatpush1.msra.mxu0 0.0
    %777 = vmatprep.subr.mxu0 0.0
    %778 = vmatpush1.msra.mxu0 0.0
    %779 = vmatprep.subr.mxu0 0.0
    %780 = vmatpush1.msra.mxu0 0.0
    %781 = vmatprep.subr.mxu0 0.0
    %782 = vmatpush1.msra.mxu0 0.0
    %783 = vmatprep.subr.mxu0 0.0
    %784 = vmatpush1.msra.mxu0 0.0
    %785 = vmatprep.subr.mxu0 0.0
    %786 = vmatpush1.msra.mxu0 0.0
    %787 = vmatprep.mubr.f32.mxu0 0.0
    %788 = vmatmul.mubr.f32.gmra.mrb[0].mxu0 %v718
    %v789 = vpop.f32.mrb[0].mxu0
    %v790 = vadd.f32 0.0, %v789
    %v791 = vpop.f32.mrb[0].mxu0
    %792 = vmatprep.mubr.f32.mxu0 0.0
    %793 = vmatmul.mubr.f32.gmra.mrb[0].mxu0 %v721
    %v794 = vpop.f32.mrb[0].mxu0
    %v795 = vadd.f32 0.0, %v794
    %v796 = vpop.f32.mrb[0].mxu0
    %797 = vdwg.mxu0
    %v798 = vmul.f32 %v790, 0.35355338
    %v799 = vmul.f32 %v795, 0.35355338
    %v800 = vmax.f32 %v496, %v598
    %v801 = vmax.f32 %v497, %v599
    %v802 = vmax.f32 %v800, %v698
    %v803 = vmax.f32 %v801, %v699
    %v804 = vmax.f32 %v802, %v798
    %v805 = vmax.f32 %v803, %v799
    %v806 = vsub.f32 %v496, %v804
    %v807 = vsub.f32 %v497, %v805
    %v808 = vmul.f32 %v806, 1.442695
    %v809 = vpow.pop %v808
    %v810 = vmul.f32 %v807, 1.442695
    %v811 = vpow.pop %v810
    %v812 = vsub.f32 %v598, %v804
    %v813 = vsub.f32 %v599, %v805
    %v814 = vmul.f32 %v812, 1.442695
    %v815 = vpow.pop %v814
    %v816 = vmul.f32 %v813, 1.442695
    %v817 = vpow.pop %v816
    %v818 = vsub.f32 %v698, %v804
    %v819 = vsub.f32 %v699, %v805
    %v820 = vmul.f32 %v818, 1.442695
    %v821 = vpow.pop %v820
    %v822 = vmul.f32 %v819, 1.442695
    %v823 = vpow.pop %v822
    %v824 = vsub.f32 %v798, %v804
    %v825 = vsub.f32 %v799, %v805
    %v826 = vmul.f32 %v824, 1.442695
    %v827 = vpow.pop %v826
    %v828 = vmul.f32 %v825, 1.442695
    %v829 = vpow.pop %v828
    %v830 = vadd.f32 %v809, %v815
    %v831 = vadd.f32 %v811, %v817
    %v832 = vadd.f32 %v830, %v821
    %v833 = vadd.f32 %v831, %v823
    %v834 = vadd.f32 %v832, %v827
    %v835 = vadd.f32 %v833, %v829
    %v836 = vrcp.pop %v834
    %v837 = vrcp.pop %v835
    %v838 = vmul.f32 %v809, %v836
    %v839 = vmul.f32 %v811, %v837
    %v840 = vmul.f32 %v815, %v836
    %v841 = vmul.f32 %v817, %v837
    %v842 = vmul.f32 %v821, %v836
    %v843 = vmul.f32 %v823, %v837
    %v844 = vmul.f32 %v827, %v836
    %v845 = vmul.f32 %v829, %v837
    %vm846 = vcmask 31744
    %v848 = vsel %vm846, %v838, 0
    %v851 = vsel %vm846, %v839, 0
    %vm853 = vcmask 1043456
    %v855 = vsel %vm853, %v412, 0
    %857 = vmatprep.subr.mxu0 0.0
    %858 = vmatpush1.msra.mxu0 %v855
    %859 = vmatprep.subr.mxu0 0.0
    %860 = vmatpush1.msra.mxu0 0.0
    %861 = vmatprep.subr.mxu0 0.0
    %862 = vmatpush1.msra.mxu0 0.0
    %863 = vmatprep.subr.mxu0 0.0
    %864 = vmatpush1.msra.mxu0 0.0
    %865 = vmatprep.subr.mxu0 0.0
    %866 = vmatpush1.msra.mxu0 0.0
    %867 = vmatprep.subr.mxu0 0.0
    %868 = vmatpush1.msra.mxu0 0.0
    %869 = vmatprep.subr.mxu0 0.0
    %870 = vmatpush1.msra.mxu0 0.0
    %871 = vmatprep.subr.mxu0 0.0
    %872 = vmatpush1.msra.mxu0 0.0
    %873 = vmatprep.subr.mxu0 0.0
    %874 = vmatpush1.msra.mxu0 0.0
    %875 = vmatprep.subr.mxu0 0.0
    %876 = vmatpush1.msra.mxu0 0.0
    %877 = vmatprep.subr.mxu0 0.0
    %878 = vmatpush1.msra.mxu0 0.0
    %879 = vmatprep.subr.mxu0 0.0
    %880 = vmatpush1.msra.mxu0 0.0
    %881 = vmatprep.subr.mxu0 0.0
    %882 = vmatpush1.msra.mxu0 0.0
    %883 = vmatprep.subr.mxu0 0.0
    %884 = vmatpush1.msra.mxu0 0.0
    %885 = vmatprep.subr.mxu0 0.0
    %886 = vmatpush1.msra.mxu0 0.0
    %887 = vmatprep.subr.mxu0 0.0
    %888 = vmatpush1.msra.mxu0 0.0
    %889 = vmatprep.subr.mxu0 0.0
    %890 = vmatpush1.msra.mxu0 0.0
    %891 = vmatprep.subr.mxu0 0.0
    %892 = vmatpush1.msra.mxu0 0.0
    %893 = vmatprep.subr.mxu0 0.0
    %894 = vmatpush1.msra.mxu0 0.0
    %895 = vmatprep.subr.mxu0 0.0
    %896 = vmatpush1.msra.mxu0 0.0
    %897 = vmatprep.subr.mxu0 0.0
    %898 = vmatpush1.msra.mxu0 0.0
    %899 = vmatprep.subr.mxu0 0.0
    %900 = vmatpush1.msra.mxu0 0.0
    %901 = vmatprep.subr.mxu0 0.0
    %902 = vmatpush1.msra.mxu0 0.0
    %903 = vmatprep.subr.mxu0 0.0
    %904 = vmatpush1.msra.mxu0 0.0
    %905 = vmatprep.subr.mxu0 0.0
    %906 = vmatpush1.msra.mxu0 0.0
    %907 = vmatprep.subr.mxu0 0.0
    %908 = vmatpush1.msra.mxu0 0.0
    %909 = vmatprep.subr.mxu0 0.0
    %910 = vmatpush1.msra.mxu0 0.0
    %911 = vmatprep.subr.mxu0 0.0
    %912 = vmatpush1.msra.mxu0 0.0
    %913 = vmatprep.subr.mxu0 0.0
    %914 = vmatpush1.msra.mxu0 0.0
    %915 = vmatprep.subr.mxu0 0.0
    %916 = vmatpush1.msra.mxu0 0.0
    %917 = vmatprep.subr.mxu0 0.0
    %918 = vmatpush1.msra.mxu0 0.0
    %919 = vmatprep.subr.mxu0 0.0
    %920 = vmatpush1.msra.mxu0 0.0
    %921 = vmatprep.mubr.f32.mxu0 0.0
    %922 = vmatmul.mubr.f32.gmra.mrb[0].mxu0 %v848
    %v923 = vpop.f32.mrb[0].mxu0
    %v924 = vadd.f32 0.0, %v923
    %v925 = vpop.f32.mrb[0].mxu0
    %926 = vmatprep.mubr.f32.mxu0 0.0
    %927 = vmatmul.mubr.f32.gmra.mrb[0].mxu0 %v851
    %v928 = vpop.f32.mrb[0].mxu0
    %v929 = vadd.f32 0.0, %v928
    %v930 = vpop.f32.mrb[0].mxu0
    %931 = vdwg.mxu0
    %v932 = vmul.f32 %v924, %v367
    %v933 = vmul.f32 %v929, %v372
    %v935 = vsel %vm846, %v840, 0
    %v938 = vsel %vm846, %v841, 0
    %940 = vmatprep.subr.mxu0 0.0
    %941 = vmatpush1.msra.mxu0 %v855
    %942 = vmatprep.subr.mxu0 0.0
    %943 = vmatpush1.msra.mxu0 0.0
    %944 = vmatprep.subr.mxu0 0.0
    %945 = vmatpush1.msra.mxu0 0.0
    %946 = vmatprep.subr.mxu0 0.0
    %947 = vmatpush1.msra.mxu0 0.0
    %948 = vmatprep.subr.mxu0 0.0
    %949 = vmatpush1.msra.mxu0 0.0
    %950 = vmatprep.subr.mxu0 0.0
    %951 = vmatpush1.msra.mxu0 0.0
    %952 = vmatprep.subr.mxu0 0.0
    %953 = vmatpush1.msra.mxu0 0.0
    %954 = vmatprep.subr.mxu0 0.0
    %955 = vmatpush1.msra.mxu0 0.0
    %956 = vmatprep.subr.mxu0 0.0
    %957 = vmatpush1.msra.mxu0 0.0
    %958 = vmatprep.subr.mxu0 0.0
    %959 = vmatpush1.msra.mxu0 0.0
    %960 = vmatprep.subr.mxu0 0.0
    %961 = vmatpush1.msra.mxu0 0.0
    %962 = vmatprep.subr.mxu0 0.0
    %963 = vmatpush1.msra.mxu0 0.0
    %964 = vmatprep.subr.mxu0 0.0
    %965 = vmatpush1.msra.mxu0 0.0
    %966 = vmatprep.subr.mxu0 0.0
    %967 = vmatpush1.msra.mxu0 0.0
    %968 = vmatprep.subr.mxu0 0.0
    %969 = vmatpush1.msra.mxu0 0.0
    %970 = vmatprep.subr.mxu0 0.0
    %971 = vmatpush1.msra.mxu0 0.0
    %972 = vmatprep.subr.mxu0 0.0
    %973 = vmatpush1.msra.mxu0 0.0
    %974 = vmatprep.subr.mxu0 0.0
    %975 = vmatpush1.msra.mxu0 0.0
    %976 = vmatprep.subr.mxu0 0.0
    %977 = vmatpush1.msra.mxu0 0.0
    %978 = vmatprep.subr.mxu0 0.0
    %979 = vmatpush1.msra.mxu0 0.0
    %980 = vmatprep.subr.mxu0 0.0
    %981 = vmatpush1.msra.mxu0 0.0
    %982 = vmatprep.subr.mxu0 0.0
    %983 = vmatpush1.msra.mxu0 0.0
    %984 = vmatprep.subr.mxu0 0.0
    %985 = vmatpush1.msra.mxu0 0.0
    %986 = vmatprep.subr.mxu0 0.0
    %987 = vmatpush1.msra.mxu0 0.0
    %988 = vmatprep.subr.mxu0 0.0
    %989 = vmatpush1.msra.mxu0 0.0
    %990 = vmatprep.subr.mxu0 0.0
    %991 = vmatpush1.msra.mxu0 0.0
    %992 = vmatprep.subr.mxu0 0.0
    %993 = vmatpush1.msra.mxu0 0.0
    %994 = vmatprep.subr.mxu0 0.0
    %995 = vmatpush1.msra.mxu0 0.0
    %996 = vmatprep.subr.mxu0 0.0
    %997 = vmatpush1.msra.mxu0 0.0
    %998 = vmatprep.subr.mxu0 0.0
    %999 = vmatpush1.msra.mxu0 0.0
    %1000 = vmatprep.subr.mxu0 0.0
    %1001 = vmatpush1.msra.mxu0 0.0
    %1002 = vmatprep.subr.mxu0 0.0
    %1003 = vmatpush1.msra.mxu0 0.0
    %1004 = vmatprep.mubr.f32.mxu0 0.0
    %1005 = vmatmul.mubr.f32.gmra.mrb[0].mxu0 %v935
    %v1006 = vpop.f32.mrb[0].mxu0
    %v1007 = vadd.f32 0.0, %v1006
    %v1008 = vpop.f32.mrb[0].mxu0
    %1009 = vmatprep.mubr.f32.mxu0 0.0
    %1010 = vmatmul.mubr.f32.gmra.mrb[0].mxu0 %v938
    %v1011 = vpop.f32.mrb[0].mxu0
    %v1012 = vadd.f32 0.0, %v1011
    %v1013 = vpop.f32.mrb[0].mxu0
    %1014 = vdwg.mxu0
    %1017 = vrot.lane.b32.xlu0 %v367, 104
    %v1018 = vpop.permute.xlu0 %1017
    %1019 = vrot.lane.b32.xlu0 %v372, 104
    %v1020 = vpop.permute.xlu0 %1019
    %1023 = vrot.lane.b32.xlu0 %v367, 8
    %v1024 = vpop.permute.xlu0 %1023
    %1025 = vrot.lane.b32.xlu0 %v372, 8
    %v1026 = vpop.permute.xlu0 %1025
    %v1029 = vsel %vm512, %v1018, %v1024
    %v1030 = vsel %vm512, %v1020, %v1026
    %v1031 = vmul.f32 %v1007, %v1029
    %v1032 = vmul.f32 %v1012, %v1030
    %v1033 = vadd.f32 %v932, %v1031
    %v1034 = vadd.f32 %v933, %v1032
    %v1036 = vsel %vm846, %v842, 0
    %v1039 = vsel %vm846, %v843, 0
    %1041 = vmatprep.subr.mxu0 0.0
    %1042 = vmatpush1.msra.mxu0 %v855
    %1043 = vmatprep.subr.mxu0 0.0
    %1044 = vmatpush1.msra.mxu0 0.0
    %1045 = vmatprep.subr.mxu0 0.0
    %1046 = vmatpush1.msra.mxu0 0.0
    %1047 = vmatprep.subr.mxu0 0.0
    %1048 = vmatpush1.msra.mxu0 0.0
    %1049 = vmatprep.subr.mxu0 0.0
    %1050 = vmatpush1.msra.mxu0 0.0
    %1051 = vmatprep.subr.mxu0 0.0
    %1052 = vmatpush1.msra.mxu0 0.0
    %1053 = vmatprep.subr.mxu0 0.0
    %1054 = vmatpush1.msra.mxu0 0.0
    %1055 = vmatprep.subr.mxu0 0.0
    %1056 = vmatpush1.msra.mxu0 0.0
    %1057 = vmatprep.subr.mxu0 0.0
    %1058 = vmatpush1.msra.mxu0 0.0
    %1059 = vmatprep.subr.mxu0 0.0
    %1060 = vmatpush1.msra.mxu0 0.0
    %1061 = vmatprep.subr.mxu0 0.0
    %1062 = vmatpush1.msra.mxu0 0.0
    %1063 = vmatprep.subr.mxu0 0.0
    %1064 = vmatpush1.msra.mxu0 0.0
    %1065 = vmatprep.subr.mxu0 0.0
    %1066 = vmatpush1.msra.mxu0 0.0
    %1067 = vmatprep.subr.mxu0 0.0
    %1068 = vmatpush1.msra.mxu0 0.0
    %1069 = vmatprep.subr.mxu0 0.0
    %1070 = vmatpush1.msra.mxu0 0.0
    %1071 = vmatprep.subr.mxu0 0.0
    %1072 = vmatpush1.msra.mxu0 0.0
    %1073 = vmatprep.subr.mxu0 0.0
    %1074 = vmatpush1.msra.mxu0 0.0
    %1075 = vmatprep.subr.mxu0 0.0
    %1076 = vmatpush1.msra.mxu0 0.0
    %1077 = vmatprep.subr.mxu0 0.0
    %1078 = vmatpush1.msra.mxu0 0.0
    %1079 = vmatprep.subr.mxu0 0.0
    %1080 = vmatpush1.msra.mxu0 0.0
    %1081 = vmatprep.subr.mxu0 0.0
    %1082 = vmatpush1.msra.mxu0 0.0
    %1083 = vmatprep.subr.mxu0 0.0
    %1084 = vmatpush1.msra.mxu0 0.0
    %1085 = vmatprep.subr.mxu0 0.0
    %1086 = vmatpush1.msra.mxu0 0.0
    %1087 = vmatprep.subr.mxu0 0.0
    %1088 = vmatpush1.msra.mxu0 0.0
    %1089 = vmatprep.subr.mxu0 0.0
    %1090 = vmatpush1.msra.mxu0 0.0
    %1091 = vmatprep.subr.mxu0 0.0
    %1092 = vmatpush1.msra.mxu0 0.0
    %1093 = vmatprep.subr.mxu0 0.0
    %1094 = vmatpush1.msra.mxu0 0.0
    %1095 = vmatprep.subr.mxu0 0.0
    %1096 = vmatpush1.msra.mxu0 0.0
    %1097 = vmatprep.subr.mxu0 0.0
    %1098 = vmatpush1.msra.mxu0 0.0
    %1099 = vmatprep.subr.mxu0 0.0
    %1100 = vmatpush1.msra.mxu0 0.0
    %1101 = vmatprep.subr.mxu0 0.0
    %1102 = vmatpush1.msra.mxu0 0.0
    %1103 = vmatprep.subr.mxu0 0.0
    %1104 = vmatpush1.msra.mxu0 0.0
    %1105 = vmatprep.mubr.f32.mxu0 0.0
    %1106 = vmatmul.mubr.f32.gmra.mrb[0].mxu0 %v1036
    %v1107 = vpop.f32.mrb[0].mxu0
    %v1108 = vadd.f32 0.0, %v1107
    %v1109 = vpop.f32.mrb[0].mxu0
    %1110 = vmatprep.mubr.f32.mxu0 0.0
    %1111 = vmatmul.mubr.f32.gmra.mrb[0].mxu0 %v1039
    %v1112 = vpop.f32.mrb[0].mxu0
    %v1113 = vadd.f32 0.0, %v1112
    %v1114 = vpop.f32.mrb[0].mxu0
    %1115 = vdwg.mxu0
    %1116 = vrot.lane.b32.xlu0 %v367, 112
    %v1117 = vpop.permute.xlu0 %1116
    %1118 = vrot.lane.b32.xlu0 %v372, 112
    %v1119 = vpop.permute.xlu0 %1118
    %1122 = vrot.lane.b32.xlu0 %v367, 16
    %v1123 = vpop.permute.xlu0 %1122
    %1124 = vrot.lane.b32.xlu0 %v372, 16
    %v1125 = vpop.permute.xlu0 %1124
    %v1128 = vsel %vm612, %v1117, %v1123
    %v1129 = vsel %vm612, %v1119, %v1125
    %v1130 = vmul.f32 %v1108, %v1128
    %v1131 = vmul.f32 %v1113, %v1129
    %v1132 = vadd.f32 %v1033, %v1130
    %v1133 = vadd.f32 %v1034, %v1131
    %v1135 = vsel %vm846, %v844, 0
    %v1138 = vsel %vm846, %v845, 0
    %1140 = vmatprep.subr.mxu0 0.0
    %1141 = vmatpush1.msra.mxu0 %v855
    %1142 = vmatprep.subr.mxu0 0.0
    %1143 = vmatpush1.msra.mxu0 0.0
    %1144 = vmatprep.subr.mxu0 0.0
    %1145 = vmatpush1.msra.mxu0 0.0
    %1146 = vmatprep.subr.mxu0 0.0
    %1147 = vmatpush1.msra.mxu0 0.0
    %1148 = vmatprep.subr.mxu0 0.0
    %1149 = vmatpush1.msra.mxu0 0.0
    %1150 = vmatprep.subr.mxu0 0.0
    %1151 = vmatpush1.msra.mxu0 0.0
    %1152 = vmatprep.subr.mxu0 0.0
    %1153 = vmatpush1.msra.mxu0 0.0
    %1154 = vmatprep.subr.mxu0 0.0
    %1155 = vmatpush1.msra.mxu0 0.0
    %1156 = vmatprep.subr.mxu0 0.0
    %1157 = vmatpush1.msra.mxu0 0.0
    %1158 = vmatprep.subr.mxu0 0.0
    %1159 = vmatpush1.msra.mxu0 0.0
    %1160 = vmatprep.subr.mxu0 0.0
    %1161 = vmatpush1.msra.mxu0 0.0
    %1162 = vmatprep.subr.mxu0 0.0
    %1163 = vmatpush1.msra.mxu0 0.0
    %1164 = vmatprep.subr.mxu0 0.0
    %1165 = vmatpush1.msra.mxu0 0.0
    %1166 = vmatprep.subr.mxu0 0.0
    %1167 = vmatpush1.msra.mxu0 0.0
    %1168 = vmatprep.subr.mxu0 0.0
    %1169 = vmatpush1.msra.mxu0 0.0
    %1170 = vmatprep.subr.mxu0 0.0
    %1171 = vmatpush1.msra.mxu0 0.0
    %1172 = vmatprep.subr.mxu0 0.0
    %1173 = vmatpush1.msra.mxu0 0.0
    %1174 = vmatprep.subr.mxu0 0.0
    %1175 = vmatpush1.msra.mxu0 0.0
    %1176 = vmatprep.subr.mxu0 0.0
    %1177 = vmatpush1.msra.mxu0 0.0
    %1178 = vmatprep.subr.mxu0 0.0
    %1179 = vmatpush1.msra.mxu0 0.0
    %1180 = vmatprep.subr.mxu0 0.0
    %1181 = vmatpush1.msra.mxu0 0.0
    %1182 = vmatprep.subr.mxu0 0.0
    %1183 = vmatpush1.msra.mxu0 0.0
    %1184 = vmatprep.subr.mxu0 0.0
    %1185 = vmatpush1.msra.mxu0 0.0
    %1186 = vmatprep.subr.mxu0 0.0
    %1187 = vmatpush1.msra.mxu0 0.0
    %1188 = vmatprep.subr.mxu0 0.0
    %1189 = vmatpush1.msra.mxu0 0.0
    %1190 = vmatprep.subr.mxu0 0.0
    %1191 = vmatpush1.msra.mxu0 0.0
    %1192 = vmatprep.subr.mxu0 0.0
    %1193 = vmatpush1.msra.mxu0 0.0
    %1194 = vmatprep.subr.mxu0 0.0
    %1195 = vmatpush1.msra.mxu0 0.0
    %1196 = vmatprep.subr.mxu0 0.0
    %1197 = vmatpush1.msra.mxu0 0.0
    %1198 = vmatprep.subr.mxu0 0.0
    %1199 = vmatpush1.msra.mxu0 0.0
    %1200 = vmatprep.subr.mxu0 0.0
    %1201 = vmatpush1.msra.mxu0 0.0
    %1202 = vmatprep.subr.mxu0 0.0
    %1203 = vmatpush1.msra.mxu0 0.0
    %1204 = vmatprep.mubr.f32.mxu0 0.0
    %1205 = vmatmul.mubr.f32.gmra.mrb[0].mxu0 %v1135
    %v1206 = vpop.f32.mrb[0].mxu0
    %v1207 = vadd.f32 0.0, %v1206
    %v1208 = vpop.f32.mrb[0].mxu0
    %1209 = vmatprep.mubr.f32.mxu0 0.0
    %1210 = vmatmul.mubr.f32.gmra.mrb[0].mxu0 %v1138
    %v1211 = vpop.f32.mrb[0].mxu0
    %v1212 = vadd.f32 0.0, %v1211
    %v1213 = vpop.f32.mrb[0].mxu0
    %1214 = vdwg.mxu0
    %1215 = vrot.lane.b32.xlu0 %v367, 120
    %v1216 = vpop.permute.xlu0 %1215
    %1217 = vrot.lane.b32.xlu0 %v372, 120
    %v1218 = vpop.permute.xlu0 %1217
    %1221 = vrot.lane.b32.xlu0 %v367, 24
    %v1222 = vpop.permute.xlu0 %1221
    %1223 = vrot.lane.b32.xlu0 %v372, 24
    %v1224 = vpop.permute.xlu0 %1223
    %v1227 = vsel %vm712, %v1216, %v1222
    %v1228 = vsel %vm712, %v1218, %v1224
    %v1229 = vmul.f32 %v1207, %v1227
    %v1230 = vmul.f32 %v1212, %v1228
    %v1231 = vadd.f32 %v1132, %v1229
    %v1232 = vadd.f32 %v1133, %v1230
    %vm1233 = vcmp.ge.s32.totalorder %v376, 0
    %v1234 = vadd.s32 %v376, 4
    %v1235 = vsel %vm1233, %v376, %v1234
    %v1236 = vmul.u32 %v376, 4
    %v1237 = vadd.s32 %v1236, %v1235
    %vm1238 = vcmp.eq.s32.totalorder %v381, %v1237
    %v1239 = vsel %vm1238, 1, 0
    %v1240 = vcvt.s32.f32 %v1239
    %vm1241 = vcmp.ge.s32.totalorder %v376, 1
    %v1242 = vsub.s32 %v376, 1
    %v1243 = vadd.s32 %v1242, 4
    %v1244 = vsel %vm1241, %v1242, %v1243
    %v1245 = vadd.s32 %v1236, %v1244
    %vm1246 = vcmp.eq.s32.totalorder %v381, %v1245
    %v1247 = vsel %vm1246, 1, 0
    %v1248 = vcvt.s32.f32 %v1247
    %v1250 = vsel %vm853, %v1248, 0
    %1252 = vmatprep.subr.mxu0 0.0
    %1253 = vmatpush1.msra.mxu0 %v1250
    %1254 = vmatprep.subr.mxu0 0.0
    %1255 = vmatpush1.msra.mxu0 0.0
    %1256 = vmatprep.subr.mxu0 0.0
    %1257 = vmatpush1.msra.mxu0 0.0
    %1258 = vmatprep.subr.mxu0 0.0
    %1259 = vmatpush1.msra.mxu0 0.0
    %1260 = vmatprep.subr.mxu0 0.0
    %1261 = vmatpush1.msra.mxu0 0.0
    %1262 = vmatprep.subr.mxu0 0.0
    %1263 = vmatpush1.msra.mxu0 0.0
    %1264 = vmatprep.subr.mxu0 0.0
    %1265 = vmatpush1.msra.mxu0 0.0
    %1266 = vmatprep.subr.mxu0 0.0
    %1267 = vmatpush1.msra.mxu0 0.0
    %1268 = vmatprep.subr.mxu0 0.0
    %1269 = vmatpush1.msra.mxu0 0.0
    %1270 = vmatprep.subr.mxu0 0.0
    %1271 = vmatpush1.msra.mxu0 0.0
    %1272 = vmatprep.subr.mxu0 0.0
    %1273 = vmatpush1.msra.mxu0 0.0
    %1274 = vmatprep.subr.mxu0 0.0
    %1275 = vmatpush1.msra.mxu0 0.0
    %1276 = vmatprep.subr.mxu0 0.0
    %1277 = vmatpush1.msra.mxu0 0.0
    %1278 = vmatprep.subr.mxu0 0.0
    %1279 = vmatpush1.msra.mxu0 0.0
    %1280 = vmatprep.subr.mxu0 0.0
    %1281 = vmatpush1.msra.mxu0 0.0
    %1282 = vmatprep.subr.mxu0 0.0
    %1283 = vmatpush1.msra.mxu0 0.0
    %1284 = vmatprep.subr.mxu0 0.0
    %1285 = vmatpush1.msra.mxu0 0.0
    %1286 = vmatprep.subr.mxu0 0.0
    %1287 = vmatpush1.msra.mxu0 0.0
    %1288 = vmatprep.subr.mxu0 0.0
    %1289 = vmatpush1.msra.mxu0 0.0
    %1290 = vmatprep.subr.mxu0 0.0
    %1291 = vmatpush1.msra.mxu0 0.0
    %1292 = vmatprep.subr.mxu0 0.0
    %1293 = vmatpush1.msra.mxu0 0.0
    %1294 = vmatprep.subr.mxu0 0.0
    %1295 = vmatpush1.msra.mxu0 0.0
    %1296 = vmatprep.subr.mxu0 0.0
    %1297 = vmatpush1.msra.mxu0 0.0
    %1298 = vmatprep.subr.mxu0 0.0
    %1299 = vmatpush1.msra.mxu0 0.0
    %1300 = vmatprep.subr.mxu0 0.0
    %1301 = vmatpush1.msra.mxu0 0.0
    %1302 = vmatprep.subr.mxu0 0.0
    %1303 = vmatpush1.msra.mxu0 0.0
    %1304 = vmatprep.subr.mxu0 0.0
    %1305 = vmatpush1.msra.mxu0 0.0
    %1306 = vmatprep.subr.mxu0 0.0
    %1307 = vmatpush1.msra.mxu0 0.0
    %1308 = vmatprep.subr.mxu0 0.0
    %1309 = vmatpush1.msra.mxu0 0.0
    %1310 = vmatprep.subr.mxu0 0.0
    %1311 = vmatpush1.msra.mxu0 0.0
    %1312 = vmatprep.subr.mxu0 0.0
    %1313 = vmatpush1.msra.mxu0 0.0
    %1314 = vmatprep.subr.mxu0 0.0
    %1315 = vmatpush1.msra.mxu0 0.0
    %1316 = vmatprep.mubr.f32.mxu0 0.0
    %1317 = vmatmul.mubr.f32.gmra.mrb[0].mxu0 %v935
    %v1318 = vpop.f32.mrb[0].mxu0
    %v1319 = vadd.f32 0.0, %v1318
    %v1320 = vpop.f32.mrb[0].mxu0
    %1321 = vmatprep.mubr.f32.mxu0 0.0
    %1322 = vmatmul.mubr.f32.gmra.mrb[0].mxu0 %v938
    %v1323 = vpop.f32.mrb[0].mxu0
    %v1324 = vadd.f32 0.0, %v1323
    %v1325 = vpop.f32.mrb[0].mxu0
    %1326 = vdwg.mxu0
    %v1328 = vsel %vm853, %v1240, 0
    %1330 = vmatprep.subr.mxu0 0.0
    %1331 = vmatpush1.msra.mxu0 %v1328
    %1332 = vmatprep.subr.mxu0 0.0
    %1333 = vmatpush1.msra.mxu0 0.0
    %1334 = vmatprep.subr.mxu0 0.0
    %1335 = vmatpush1.msra.mxu0 0.0
    %1336 = vmatprep.subr.mxu0 0.0
    %1337 = vmatpush1.msra.mxu0 0.0
    %1338 = vmatprep.subr.mxu0 0.0
    %1339 = vmatpush1.msra.mxu0 0.0
    %1340 = vmatprep.subr.mxu0 0.0
    %1341 = vmatpush1.msra.mxu0 0.0
    %1342 = vmatprep.subr.mxu0 0.0
    %1343 = vmatpush1.msra.mxu0 0.0
    %1344 = vmatprep.subr.mxu0 0.0
    %1345 = vmatpush1.msra.mxu0 0.0
    %1346 = vmatprep.subr.mxu0 0.0
    %1347 = vmatpush1.msra.mxu0 0.0
    %1348 = vmatprep.subr.mxu0 0.0
    %1349 = vmatpush1.msra.mxu0 0.0
    %1350 = vmatprep.subr.mxu0 0.0
    %1351 = vmatpush1.msra.mxu0 0.0
    %1352 = vmatprep.subr.mxu0 0.0
    %1353 = vmatpush1.msra.mxu0 0.0
    %1354 = vmatprep.subr.mxu0 0.0
    %1355 = vmatpush1.msra.mxu0 0.0
    %1356 = vmatprep.subr.mxu0 0.0
    %1357 = vmatpush1.msra.mxu0 0.0
    %1358 = vmatprep.subr.mxu0 0.0
    %1359 = vmatpush1.msra.mxu0 0.0
    %1360 = vmatprep.subr.mxu0 0.0
    %1361 = vmatpush1.msra.mxu0 0.0
    %1362 = vmatprep.subr.mxu0 0.0
    %1363 = vmatpush1.msra.mxu0 0.0
    %1364 = vmatprep.subr.mxu0 0.0
    %1365 = vmatpush1.msra.mxu0 0.0
    %1366 = vmatprep.subr.mxu0 0.0
    %1367 = vmatpush1.msra.mxu0 0.0
    %1368 = vmatprep.subr.mxu0 0.0
    %1369 = vmatpush1.msra.mxu0 0.0
    %1370 = vmatprep.subr.mxu0 0.0
    %1371 = vmatpush1.msra.mxu0 0.0
    %1372 = vmatprep.subr.mxu0 0.0
    %1373 = vmatpush1.msra.mxu0 0.0
    %1374 = vmatprep.subr.mxu0 0.0
    %1375 = vmatpush1.msra.mxu0 0.0
    %1376 = vmatprep.subr.mxu0 0.0
    %1377 = vmatpush1.msra.mxu0 0.0
    %1378 = vmatprep.subr.mxu0 0.0
    %1379 = vmatpush1.msra.mxu0 0.0
    %1380 = vmatprep.subr.mxu0 0.0
    %1381 = vmatpush1.msra.mxu0 0.0
    %1382 = vmatprep.subr.mxu0 0.0
    %1383 = vmatpush1.msra.mxu0 0.0
    %1384 = vmatprep.subr.mxu0 0.0
    %1385 = vmatpush1.msra.mxu0 0.0
    %1386 = vmatprep.subr.mxu0 0.0
    %1387 = vmatpush1.msra.mxu0 0.0
    %1388 = vmatprep.subr.mxu0 0.0
    %1389 = vmatpush1.msra.mxu0 0.0
    %1390 = vmatprep.subr.mxu0 0.0
    %1391 = vmatpush1.msra.mxu0 0.0
    %1392 = vmatprep.subr.mxu0 0.0
    %1393 = vmatpush1.msra.mxu0 0.0
    %1394 = vmatprep.mubr.f32.mxu0 0.0
    %1395 = vmatmul.mubr.f32.gmra.mrb[0].mxu0 %v848
    %v1396 = vpop.f32.mrb[0].mxu0
    %v1397 = vadd.f32 %v1319, %v1396
    %v1398 = vpop.f32.mrb[0].mxu0
    %1399 = vmatprep.mubr.f32.mxu0 0.0
    %1400 = vmatmul.mubr.f32.gmra.mrb[0].mxu0 %v851
    %v1401 = vpop.f32.mrb[0].mxu0
    %v1402 = vadd.f32 %v1324, %v1401
    %v1403 = vpop.f32.mrb[0].mxu0
    %1404 = vdwg.mxu0
    %vm1405 = vcmp.ge.s32.totalorder %v376, 2
    %v1406 = vsub.s32 %v376, 2
    %v1407 = vadd.s32 %v1406, 4
    %v1408 = vsel %vm1405, %v1406, %v1407
    %v1409 = vadd.s32 %v1236, %v1408
    %vm1410 = vcmp.eq.s32.totalorder %v381, %v1409
    %v1411 = vsel %vm1410, 1, 0
    %v1412 = vcvt.s32.f32 %v1411
    %v1414 = vsel %vm853, %v1412, 0
    %1416 = vmatprep.subr.mxu0 0.0
    %1417 = vmatpush1.msra.mxu0 %v1414
    %1418 = vmatprep.subr.mxu0 0.0
    %1419 = vmatpush1.msra.mxu0 0.0
    %1420 = vmatprep.subr.mxu0 0.0
    %1421 = vmatpush1.msra.mxu0 0.0
    %1422 = vmatprep.subr.mxu0 0.0
    %1423 = vmatpush1.msra.mxu0 0.0
    %1424 = vmatprep.subr.mxu0 0.0
    %1425 = vmatpush1.msra.mxu0 0.0
    %1426 = vmatprep.subr.mxu0 0.0
    %1427 = vmatpush1.msra.mxu0 0.0
    %1428 = vmatprep.subr.mxu0 0.0
    %1429 = vmatpush1.msra.mxu0 0.0
    %1430 = vmatprep.subr.mxu0 0.0
    %1431 = vmatpush1.msra.mxu0 0.0
    %1432 = vmatprep.subr.mxu0 0.0
    %1433 = vmatpush1.msra.mxu0 0.0
    %1434 = vmatprep.subr.mxu0 0.0
    %1435 = vmatpush1.msra.mxu0 0.0
    %1436 = vmatprep.subr.mxu0 0.0
    %1437 = vmatpush1.msra.mxu0 0.0
    %1438 = vmatprep.subr.mxu0 0.0
    %1439 = vmatpush1.msra.mxu0 0.0
    %1440 = vmatprep.subr.mxu0 0.0
    %1441 = vmatpush1.msra.mxu0 0.0
    %1442 = vmatprep.subr.mxu0 0.0
    %1443 = vmatpush1.msra.mxu0 0.0
    %1444 = vmatprep.subr.mxu0 0.0
    %1445 = vmatpush1.msra.mxu0 0.0
    %1446 = vmatprep.subr.mxu0 0.0
    %1447 = vmatpush1.msra.mxu0 0.0
    %1448 = vmatprep.subr.mxu0 0.0
    %1449 = vmatpush1.msra.mxu0 0.0
    %1450 = vmatprep.subr.mxu0 0.0
    %1451 = vmatpush1.msra.mxu0 0.0
    %1452 = vmatprep.subr.mxu0 0.0
    %1453 = vmatpush1.msra.mxu0 0.0
    %1454 = vmatprep.subr.mxu0 0.0
    %1455 = vmatpush1.msra.mxu0 0.0
    %1456 = vmatprep.subr.mxu0 0.0
    %1457 = vmatpush1.msra.mxu0 0.0
    %1458 = vmatprep.subr.mxu0 0.0
    %1459 = vmatpush1.msra.mxu0 0.0
    %1460 = vmatprep.subr.mxu0 0.0
    %1461 = vmatpush1.msra.mxu0 0.0
    %1462 = vmatprep.subr.mxu0 0.0
    %1463 = vmatpush1.msra.mxu0 0.0
    %1464 = vmatprep.subr.mxu0 0.0
    %1465 = vmatpush1.msra.mxu0 0.0
    %1466 = vmatprep.subr.mxu0 0.0
    %1467 = vmatpush1.msra.mxu0 0.0
    %1468 = vmatprep.subr.mxu0 0.0
    %1469 = vmatpush1.msra.mxu0 0.0
    %1470 = vmatprep.subr.mxu0 0.0
    %1471 = vmatpush1.msra.mxu0 0.0
    %1472 = vmatprep.subr.mxu0 0.0
    %1473 = vmatpush1.msra.mxu0 0.0
    %1474 = vmatprep.subr.mxu0 0.0
    %1475 = vmatpush1.msra.mxu0 0.0
    %1476 = vmatprep.subr.mxu0 0.0
    %1477 = vmatpush1.msra.mxu0 0.0
    %1478 = vmatprep.subr.mxu0 0.0
    %1479 = vmatpush1.msra.mxu0 0.0
    %1480 = vmatprep.mubr.f32.mxu0 0.0
    %1481 = vmatmul.mubr.f32.gmra.mrb[0].mxu0 %v1036
    %v1482 = vpop.f32.mrb[0].mxu0
    %v1483 = vadd.f32 0.0, %v1482
    %v1484 = vpop.f32.mrb[0].mxu0
    %1485 = vmatprep.mubr.f32.mxu0 0.0
    %1486 = vmatmul.mubr.f32.gmra.mrb[0].mxu0 %v1039
    %v1487 = vpop.f32.mrb[0].mxu0
    %v1488 = vadd.f32 0.0, %v1487
    %v1489 = vpop.f32.mrb[0].mxu0
    %1490 = vdwg.mxu0
    %v1491 = vadd.f32 %v1397, %v1483
    %v1492 = vadd.f32 %v1402, %v1488
    %vm1493 = vcmp.ge.s32.totalorder %v376, 3
    %v1494 = vsub.s32 %v376, 3
    %v1495 = vadd.s32 %v1494, 4
    %v1496 = vsel %vm1493, %v1494, %v1495
    %v1497 = vadd.s32 %v1236, %v1496
    %vm1498 = vcmp.eq.s32.totalorder %v381, %v1497
    %v1499 = vsel %vm1498, 1, 0
    %v1500 = vcvt.s32.f32 %v1499
    %v1502 = vsel %vm853, %v1500, 0
    %1504 = vmatprep.subr.mxu0 0.0
    %1505 = vmatpush1.msra.mxu0 %v1502
    %1506 = vmatprep.subr.mxu0 0.0
    %1507 = vmatpush1.msra.mxu0 0.0
    %1508 = vmatprep.subr.mxu0 0.0
    %1509 = vmatpush1.msra.mxu0 0.0
    %1510 = vmatprep.subr.mxu0 0.0
    %1511 = vmatpush1.msra.mxu0 0.0
    %1512 = vmatprep.subr.mxu0 0.0
    %1513 = vmatpush1.msra.mxu0 0.0
    %1514 = vmatprep.subr.mxu0 0.0
    %1515 = vmatpush1.msra.mxu0 0.0
    %1516 = vmatprep.subr.mxu0 0.0
    %1517 = vmatpush1.msra.mxu0 0.0
    %1518 = vmatprep.subr.mxu0 0.0
    %1519 = vmatpush1.msra.mxu0 0.0
    %1520 = vmatprep.subr.mxu0 0.0
    %1521 = vmatpush1.msra.mxu0 0.0
    %1522 = vmatprep.subr.mxu0 0.0
    %1523 = vmatpush1.msra.mxu0 0.0
    %1524 = vmatprep.subr.mxu0 0.0
    %1525 = vmatpush1.msra.mxu0 0.0
    %1526 = vmatprep.subr.mxu0 0.0
    %1527 = vmatpush1.msra.mxu0 0.0
    %1528 = vmatprep.subr.mxu0 0.0
    %1529 = vmatpush1.msra.mxu0 0.0
    %1530 = vmatprep.subr.mxu0 0.0
    %1531 = vmatpush1.msra.mxu0 0.0
    %1532 = vmatprep.subr.mxu0 0.0
    %1533 = vmatpush1.msra.mxu0 0.0
    %1534 = vmatprep.subr.mxu0 0.0
    %1535 = vmatpush1.msra.mxu0 0.0
    %1536 = vmatprep.subr.mxu0 0.0
    %1537 = vmatpush1.msra.mxu0 0.0
    %1538 = vmatprep.subr.mxu0 0.0
    %1539 = vmatpush1.msra.mxu0 0.0
    %1540 = vmatprep.subr.mxu0 0.0
    %1541 = vmatpush1.msra.mxu0 0.0
    %1542 = vmatprep.subr.mxu0 0.0
    %1543 = vmatpush1.msra.mxu0 0.0
    %1544 = vmatprep.subr.mxu0 0.0
    %1545 = vmatpush1.msra.mxu0 0.0
    %1546 = vmatprep.subr.mxu0 0.0
    %1547 = vmatpush1.msra.mxu0 0.0
    %1548 = vmatprep.subr.mxu0 0.0
    %1549 = vmatpush1.msra.mxu0 0.0
    %1550 = vmatprep.subr.mxu0 0.0
    %1551 = vmatpush1.msra.mxu0 0.0
    %1552 = vmatprep.subr.mxu0 0.0
    %1553 = vmatpush1.msra.mxu0 0.0
    %1554 = vmatprep.subr.mxu0 0.0
    %1555 = vmatpush1.msra.mxu0 0.0
    %1556 = vmatprep.subr.mxu0 0.0
    %1557 = vmatpush1.msra.mxu0 0.0
    %1558 = vmatprep.subr.mxu0 0.0
    %1559 = vmatpush1.msra.mxu0 0.0
    %1560 = vmatprep.subr.mxu0 0.0
    %1561 = vmatpush1.msra.mxu0 0.0
    %1562 = vmatprep.subr.mxu0 0.0
    %1563 = vmatpush1.msra.mxu0 0.0
    %1564 = vmatprep.subr.mxu0 0.0
    %1565 = vmatpush1.msra.mxu0 0.0
    %1566 = vmatprep.subr.mxu0 0.0
    %1567 = vmatpush1.msra.mxu0 0.0
    %1568 = vmatprep.mubr.f32.mxu0 0.0
    %1569 = vmatmul.mubr.f32.gmra.mrb[0].mxu0 %v1135
    %v1570 = vpop.f32.mrb[0].mxu0
    %v1571 = vadd.f32 0.0, %v1570
    %v1572 = vpop.f32.mrb[0].mxu0
    %1573 = vmatprep.mubr.f32.mxu0 0.0
    %1574 = vmatmul.mubr.f32.gmra.mrb[0].mxu0 %v1138
    %v1575 = vpop.f32.mrb[0].mxu0
    %v1576 = vadd.f32 0.0, %v1575
    %v1577 = vpop.f32.mrb[0].mxu0
    %1578 = vdwg.mxu0
    %v1579 = vadd.f32 %v1491, %v1571
    %v1580 = vadd.f32 %v1492, %v1576
    %1581 = vst [vmem:[#allocation12] sm:$0xff] %v1579
    %1582 = vst [vmem:[#allocation12 + $0x8] sm:$0xff] %v1580
    %v1583 = vld [vmem:[#allocation10] sm:$0xff]
    %v1584 = vld [vmem:[#allocation10 + $0x8] sm:$0xff]
    %v1585 = vld [vmem:[#allocation10 + $0x10] sm:$0xff]
    %v1586 = vld [vmem:[#allocation10 + $0x18] sm:$0xff]
    %v1587 = vld [vmem:[%s6] sm:$0x1]
    %v1589 = vlaneseq
    %v1590 = vshrl.u32 %v1589, 7
    %v1591 = vsub.s32 0, %v1590
    %v1592 = vrot.slane %v1587, %v1591
    %v1595 = vsel %vm109, %v1231, 0
    %v1598 = vsel %vm109, %v1232, 0
    %1600 = vmatprep.subr.mxu0 0.0
    %1601 = vmatpush1.msra.mxu0 %v1583
    %1602 = vmatprep.subr.mxu0 0.0
    %1603 = vmatpush1.msra.mxu0 %v1584
    %1604 = vmatprep.subr.mxu0 0.0
    %1605 = vmatpush1.msra.mxu0 %v1585
    %1606 = vmatprep.subr.mxu0 0.0
    %1607 = vmatpush1.msra.mxu0 %v1586
    %1608 = vmatprep.subr.mxu0 0.0
    %1609 = vmatpush1.msra.mxu0 0.0
    %1610 = vmatprep.subr.mxu0 0.0
    %1611 = vmatpush1.msra.mxu0 0.0
    %1612 = vmatprep.subr.mxu0 0.0
    %1613 = vmatpush1.msra.mxu0 0.0
    %1614 = vmatprep.subr.mxu0 0.0
    %1615 = vmatpush1.msra.mxu0 0.0
    %1616 = vmatprep.subr.mxu0 0.0
    %1617 = vmatpush1.msra.mxu0 0.0
    %1618 = vmatprep.subr.mxu0 0.0
    %1619 = vmatpush1.msra.mxu0 0.0
    %1620 = vmatprep.subr.mxu0 0.0
    %1621 = vmatpush1.msra.mxu0 0.0
    %1622 = vmatprep.subr.mxu0 0.0
    %1623 = vmatpush1.msra.mxu0 0.0
    %1624 = vmatprep.subr.mxu0 0.0
    %1625 = vmatpush1.msra.mxu0 0.0
    %1626 = vmatprep.subr.mxu0 0.0
    %1627 = vmatpush1.msra.mxu0 0.0
    %1628 = vmatprep.subr.mxu0 0.0
    %1629 = vmatpush1.msra.mxu0 0.0
    %1630 = vmatprep.subr.mxu0 0.0
    %1631 = vmatpush1.msra.mxu0 0.0
    %1632 = vmatprep.subr.mxu0 0.0
    %1633 = vmatpush1.msra.mxu0 0.0
    %1634 = vmatprep.subr.mxu0 0.0
    %1635 = vmatpush1.msra.mxu0 0.0
    %1636 = vmatprep.subr.mxu0 0.0
    %1637 = vmatpush1.msra.mxu0 0.0
    %1638 = vmatprep.subr.mxu0 0.0
    %1639 = vmatpush1.msra.mxu0 0.0
    %1640 = vmatprep.subr.mxu0 0.0
    %1641 = vmatpush1.msra.mxu0 0.0
    %1642 = vmatprep.subr.mxu0 0.0
    %1643 = vmatpush1.msra.mxu0 0.0
    %1644 = vmatprep.subr.mxu0 0.0
    %1645 = vmatpush1.msra.mxu0 0.0
    %1646 = vmatprep.subr.mxu0 0.0
    %1647 = vmatpush1.msra.mxu0 0.0
    %1648 = vmatprep.subr.mxu0 0.0
    %1649 = vmatpush1.msra.mxu0 0.0
    %1650 = vmatprep.subr.mxu0 0.0
    %1651 = vmatpush1.msra.mxu0 0.0
    %1652 = vmatprep.subr.mxu0 0.0
    %1653 = vmatpush1.msra.mxu0 0.0
    %1654 = vmatprep.subr.mxu0 0.0
    %1655 = vmatpush1.msra.mxu0 0.0
    %1656 = vmatprep.subr.mxu0 0.0
    %1657 = vmatpush1.msra.mxu0 0.0
    %1658 = vmatprep.subr.mxu0 0.0
    %1659 = vmatpush1.msra.mxu0 0.0
    %1660 = vmatprep.subr.mxu0 0.0
    %1661 = vmatpush1.msra.mxu0 0.0
    %1662 = vmatprep.subr.mxu0 0.0
    %1663 = vmatpush1.msra.mxu0 0.0
    %1664 = vmatprep.mubr.f32.mxu0 0.0
    %1665 = vmatmul.mubr.f32.gmra.mrb[0].mxu0 %v1595
    %v1666 = vpop.f32.mrb[0].mxu0
    %v1667 = vadd.f32 %v1592, %v1666
    %v1668 = vpop.f32.mrb[0].mxu0
    %1669 = vmatprep.mubr.f32.mxu0 0.0
    %1670 = vmatmul.mubr.f32.gmra.mrb[0].mxu0 %v1598
    %v1671 = vpop.f32.mrb[0].mxu0
    %v1672 = vadd.f32 %v1592, %v1671
    %v1673 = vpop.f32.mrb[0].mxu0
    %1674 = vdwg.mxu0
    %1675 = vst.msk [vmem:[#allocation11] sm:$0xff] %vm109, %v1667
    %1676 = vst.msk [vmem:[#allocation11 + $0x8] sm:$0xff] %vm109, %v1672
    // Predicated region
    $region50: #{tpu_custom_call.1} parent=1 // pred_check
      _
    $region51: #{tpu_custom_call.1} parent=1 // pred_check_branch
      %1678 = sbr.rel (0) target = $region53
    $region52: #{tpu_custom_call.1} parent=1 // pred_region
      %s1680 = ssub.s32 256, 256
      %1681 = vsyncadd [#allocation4], %s1680
      %s1682 = sshll.u32 [#allocation11], 4
      %s1683 = int_to_ptr.vmem [resolvable:$true] %s1682
      %1688 = dma.vmem_to_hbm [thread:$0]  %s1683, 256, %s7, [#allocation4], 128, 128, 8
    $region53: #{tpu_custom_call.1} parent=1 // pred_fallthru
      _
    // Predicated region
    $region54: #{tpu_custom_call.1} parent=1 // pred_check
      _
    $region55: #{tpu_custom_call.1} parent=1 // pred_check_branch
      %1690 = sbr.rel (0) target = $region57
    $region56: #{tpu_custom_call.1} parent=1 // pred_region
      %s1692 = ssub.s32 256, 256
      %1693 = vsyncadd [#allocation13], %s1692
      %s1694 = sshll.u32 [#allocation12], 4
      %s1695 = int_to_ptr.vmem [resolvable:$true] %s1694
      %1700 = dma.vmem_to_hbm [thread:$0]  %s1695, 256, %s8, [#allocation13], 128, 128, 8
    $region57: #{tpu_custom_call.1} parent=1 // pred_fallthru
      _
    // Predicated region
    $region58: #{tpu_custom_call.1} parent=1 // pred_check
      _
    $region59: #{tpu_custom_call.1} parent=1 // pred_check_branch
      %1702 = sbr.rel (0) target = $region61
    $region60: #{tpu_custom_call.1} parent=1 // pred_region
      %1703 = dma.done [#allocation4], 256
    $region61: #{tpu_custom_call.1} parent=1 // pred_fallthru
      _
    // Predicated region
    $region62: #{tpu_custom_call.1} parent=1 // pred_check
      _
    $region63: #{tpu_custom_call.1} parent=1 // pred_check_branch
      %1705 = sbr.rel (0) target = $region65
    $region64: #{tpu_custom_call.1} parent=1 // pred_region
      %1706 = dma.done [#allocation13], 256
    $region65: #{tpu_custom_call.1} parent=1 // pred_fallthru
      _
    %1707 = vsyncpa [#allocation3], 1
    %1708 = vsyncpa [#allocation6], 1
    %1709 = vsyncpa [#allocation9], 1
    %1710 = vsyncpa [#allocation4], 1
    %1711 = vsyncpa [#allocation13], 1

</llo_original>
